<compile_context>
chip_gen: v6e
topology: v6e:2x2x1
jax: 0.10.0
libtpu: 0.0.40
codegen_flags: <defaults>
</compile_context>

<pallas_src>
import math

import jax
import jax.numpy as jnp
from jax.experimental import pallas as pl
from jax.experimental.pallas import tpu as pltpu


_GATHER_ROWS = 8  # selected rows processed per gather grid step (full sublane tile)


def _round_up(x, m):
    return ((x + m - 1) // m) * m


def _sigmoid(x):
    return 1.0 / (1.0 + jnp.exp(-x))


# ---------------------------------------------------------------------------
# TopK hot path 1: scores (tiled over N, parallel grid)
# ---------------------------------------------------------------------------
def _scores_kernel(emb_ref, w_ref, mask_ref, inv_norm_ref, scores_ref):
    s = jnp.dot(emb_ref[...], w_ref[...], preferred_element_type=jnp.float32)
    scores_ref[...] = s * inv_norm_ref[0] + mask_ref[...]


def _topk_scores(z_pad, scorer, mask_pad, inv_norm, tn):
    n_pad, feats = z_pad.shape
    return pl.pallas_call(
        _scores_kernel,
        out_shape=jax.ShapeDtypeStruct((n_pad, 1), jnp.float32),
        grid=(n_pad // tn,),
        in_specs=[
            pl.BlockSpec((tn, feats), lambda i: (i, 0)),
            pl.BlockSpec((feats, 1), lambda i: (0, 0)),
            pl.BlockSpec((tn, 1), lambda i: (i, 0)),
            pl.BlockSpec(memory_space=pltpu.MemorySpace.SMEM),
        ],
        out_specs=pl.BlockSpec((tn, 1), lambda i: (i, 0)),
        compiler_params=pltpu.CompilerParams(
            dimension_semantics=("parallel",)),
    )(z_pad, scorer, mask_pad, inv_norm)


# ---------------------------------------------------------------------------
# TopK hot path 2: gather selected rows + tanh(score) scaling
# (manual DMA gather from HBM, batched 8 rows per step, scalar-prefetched idx)
# ---------------------------------------------------------------------------
def _gather_scale_kernel(idx_ref, g_ref, emb_hbm, out_ref, buf, sem):
    i = pl.program_id(0)
    base = i * _GATHER_ROWS
    copies = []
    for r in range(_GATHER_ROWS):                      # static unroll
        row = idx_ref[base + r]
        cp = pltpu.make_async_copy(emb_hbm.at[pl.ds(row, 1), :],
                                   buf.at[pl.ds(r, 1), :],
                                   sem.at[r])
        cp.start()
        copies.append(cp)
    for cp in copies:
        cp.wait()
    out_ref[...] = buf[...] * g_ref[...]               # (8, feats) * (8, 1)


def _topk_gather(idx_pad, g_pad, z_pad):
    k_pad = idx_pad.shape[0]
    feats = z_pad.shape[1]
    return pl.pallas_call(
        _gather_scale_kernel,
        out_shape=jax.ShapeDtypeStruct((k_pad, feats), jnp.float32),
        grid_spec=pltpu.PrefetchScalarGridSpec(
            num_scalar_prefetch=1,
            grid=(k_pad // _GATHER_ROWS,),
            in_specs=[
                pl.BlockSpec((_GATHER_ROWS, 1), lambda i, idx_ref: (i, 0)),
                pl.BlockSpec(memory_space=pl.ANY),     # embeddings stay in HBM
            ],
            out_specs=pl.BlockSpec((_GATHER_ROWS, feats),
                                   lambda i, idx_ref: (i, 0)),
            scratch_shapes=[
                pltpu.VMEM((_GATHER_ROWS, feats), jnp.float32),
                pltpu.SemaphoreType.DMA((_GATHER_ROWS,)),
            ]),
        compiler_params=pltpu.CompilerParams(
            dimension_semantics=("arbitrary",)),
    )(idx_pad, g_pad, z_pad)


def topk_forward(scorer, k, node_embs, mask):
    n, feats = node_embs.shape

    # 1/||scorer|| precomputed once in XLA (one scalar, passed via SMEM).
    inv_norm = (1.0 / jnp.sqrt(jnp.sum(scorer * scorer))).reshape(1)

    n8 = _round_up(n, 8)
    tn = min(512, n8)
    n_pad = _round_up(n, tn)
    z_pad = jnp.zeros((n_pad, feats), jnp.float32).at[:n].set(node_embs)
    mask_pad = jnp.full((n_pad, 1), -jnp.inf, jnp.float32).at[:n].set(mask)

    scores = _topk_scores(z_pad, scorer, mask_pad, inv_norm, tn)
    flat = scores[:n, 0]

    # TODO(synk): top-k selection (sort) has no clean Pallas TPU primitive; kept in JAX.
    vals, idx = jax.lax.top_k(flat, k)
    valid = vals > -jnp.inf
    count = jnp.sum(valid.astype(jnp.int32))
    last_valid = idx[jnp.maximum(count - 1, 0)]
    idx = jnp.where(valid, idx, last_valid).astype(jnp.int32)

    # tanh of only the selected scores (gathered at padding-corrected idx).
    g = jnp.tanh(jnp.take(flat, idx))[:, None]                    # (k, 1)

    k_pad = _round_up(k, _GATHER_ROWS)
    idx_pad = jnp.zeros((k_pad,), jnp.int32).at[:k].set(idx)
    g_pad = jnp.zeros((k_pad, 1), jnp.float32).at[:k].set(g)

    out = _topk_gather(idx_pad, g_pad, z_pad)                     # (k_pad, feats)
    # Keep feats on lanes inside the gather kernel; this tiny slice+transpose
    # fuses into the surrounding jit.
    return out[:k].T                                              # (feats, k)


# ---------------------------------------------------------------------------
# Fused mat_GRU gates: update / reset / htilda / combine in ONE kernel.
# All six weight matrices, z, Q, biases and the output live in one VMEM
# block (rows is the small GCN feature dim in EvolveGCN).
# ---------------------------------------------------------------------------
def _fused_gru_kernel(z_ref, q_ref,
                      wu_ref, uu_ref, bu_ref,
                      wr_ref, ur_ref, br_ref,
                      wh_ref, uh_ref, bh_ref,
                      out_ref):
    z = z_ref[...]
    q = q_ref[...]

    def mm(a_ref, b):
        return jnp.dot(a_ref[...], b, preferred_element_type=jnp.float32)

    upd = _sigmoid(mm(wu_ref, z) + mm(uu_ref, q) + bu_ref[...])
    rst = _sigmoid(mm(wr_ref, z) + mm(ur_ref, q) + br_ref[...])
    rq = rst * q
    h_cap = jnp.tanh(mm(wh_ref, z) + mm(uh_ref, rq) + bh_ref[...])
    out_ref[...] = (1.0 - upd) * q + upd * h_cap


def _gru_gates(params, z_topk, prev_Q):
    rows, cols = prev_Q.shape
    rr_spec = pl.BlockSpec((rows, rows), lambda i: (0, 0))   # weight matrices
    rc_spec = pl.BlockSpec((rows, cols), lambda i: (0, 0))   # z / Q / bias / out

    return pl.pallas_call(
        _fused_gru_kernel,
        out_shape=jax.ShapeDtypeStruct((rows, cols), jnp.float32),
        grid=(1,),
        in_specs=[rc_spec, rc_spec,
                  rr_spec, rr_spec, rc_spec,
                  rr_spec, rr_spec, rc_spec,
                  rr_spec, rr_spec, rc_spec],
        out_specs=rc_spec,
        compiler_params=pltpu.CompilerParams(
            dimension_semantics=("arbitrary",)),
    )(z_topk, prev_Q,
      params["W_u"], params["U_u"], params["b_u"],
      params["W_r"], params["U_r"], params["b_r"],
      params["W_h"], params["U_h"], params["b_h"])


def mat_gru_cell_forward(params, prev_Q, prev_Z, mask):
    k = prev_Q.shape[1]                                 # cols == k of TopK
    z_topk = topk_forward(params["scorer"], k, prev_Z, mask)   # (rows, cols)
    return _gru_gates(params, z_topk, prev_Q)                  # (rows, cols)


# ---------------------------------------------------------------------------
# Pure-JAX reference (mirrors the PyTorch module)
# ---------------------------------------------------------------------------
def _reference(params, prev_Q, prev_Z, mask, k):
    scorer = params["scorer"]
    scores = prev_Z @ scorer / jnp.linalg.norm(scorer) + mask
    flat = scores.reshape(-1)
    vals, idx = jax.lax.top_k(flat, k)
    valid = vals > -jnp.inf
    count = jnp.sum(valid.astype(jnp.int32))
    last_valid = idx[jnp.maximum(count - 1, 0)]
    idx = jnp.where(valid, idx, last_valid)
    z_topk = (prev_Z[idx] * jnp.tanh(flat[idx])[:, None]).T
    sig = jax.nn.sigmoid
    update = sig(params["W_u"] @ z_topk + params["U_u"] @ prev_Q + params["b_u"])
    reset = sig(params["W_r"] @ z_topk + params["U_r"] @ prev_Q + params["b_r"])
    h_cap = reset * prev_Q
    h_cap = jnp.tanh(params["W_h"] @ z_topk + params["U_h"] @ h_cap
                     + params["b_h"])
    return (1.0 - update) * prev_Q + update * h_cap


if __name__ == "__main__":
    rows, cols = 32, 8            # args.rows (embed dim), args.cols (= TopK k)
    n_nodes = 16

    key = jax.random.PRNGKey(0)
    keys = jax.random.split(key, 10)
    stdv = 1.0 / math.sqrt(rows)

    def uparam(k_, shape):
        return jax.random.uniform(k_, shape, jnp.float32, -stdv, stdv)

    params = {
        "scorer": uparam(keys[0], (rows, 1)),
        "W_u": uparam(keys[1], (rows, rows)),
        "U_u": uparam(keys[2], (rows, rows)),
        "b_u": jnp.zeros((rows, cols), jnp.float32),
        "W_r": uparam(keys[3], (rows, rows)),
        "U_r": uparam(keys[4], (rows, rows)),
        "b_r": jnp.zeros((rows, cols), jnp.float32),
        "W_h": uparam(keys[5], (rows, rows)),
        "U_h": uparam(keys[6], (rows, rows)),
        "b_h": jnp.zeros((rows, cols), jnp.float32),
    }

    prev_Q = jax.random.normal(keys[7], (rows, cols), dtype=jnp.float32)
    prev_Z = jax.random.normal(keys[8], (n_nodes, rows), dtype=jnp.float32)
    # Mask: 0 for active nodes, -inf for masked-out nodes (last 3 masked).
    mask = jnp.zeros((n_nodes, 1), jnp.float32).at[-3:, 0].set(-jnp.inf)

    fwd = jax.jit(mat_gru_cell_forward)
    new_Q = fwd(params, prev_Q, prev_Z, mask)
    new_Q = jax.block_until_ready(new_Q)

    ref = _reference(params, prev_Q, prev_Z, mask, cols)

    assert new_Q.shape == (rows, cols)
    assert jnp.allclose(new_Q, ref, atol=1e-4, rtol=1e-4), (
        float(jnp.max(jnp.abs(new_Q - ref))))
    print("KERNEL_OK")
</pallas_src>

<mosaic_0001>
module attributes {stable_mosaic.version = 11 : i64} {
  func.func @_scores_kernel(%arg0: i32, %arg1: memref<16x32xf32, #tpu.memory_space<vmem>>, %arg2: memref<32x1xf32, #tpu.memory_space<vmem>>, %arg3: memref<16x1xf32, #tpu.memory_space<vmem>>, %arg4: memref<1xf32, #tpu.memory_space<smem>>, %arg5: memref<16x1xf32, #tpu.memory_space<vmem>>) attributes {dimension_semantics = [#tpu.dimension_semantics<parallel>], iteration_bounds = array<i64: 1>, scalar_prefetch = 0 : i64, scratch_operands = 0 : i64, tpu.core_type = #tpu.core_type<tc>, window_params = [{transform_indices = @transform_0, window_bounds = array<i64: 16, 32>}, {pipeline_mode = #tpu.pipeline_mode<synchronous>, transform_indices = @transform_1, window_bounds = array<i64: 32, 1>}, {transform_indices = @transform_2, window_bounds = array<i64: 16, 1>}, {transform_indices = @transform_3, window_bounds = array<i64: 1>}, {transform_indices = @transform_4, window_bounds = array<i64: 16, 1>}]} {
    %c0 = arith.constant 0 : index
    %c0_0 = arith.constant 0 : index
    %0 = vector.load %arg1[%c0, %c0_0] : memref<16x32xf32, #tpu.memory_space<vmem>>, vector<16x32xf32>
    %c0_1 = arith.constant 0 : index
    %c0_2 = arith.constant 0 : index
    %1 = vector.load %arg2[%c0_1, %c0_2] : memref<32x1xf32, #tpu.memory_space<vmem>>, vector<32x1xf32>
    %cst = arith.constant dense<0.000000e+00> : vector<16x1xf32>
    %2 = tpu.matmul %0, %1, %cst {dimension_numbers = #tpu.dot_dimension_numbers<[1], [0], [0], [1], [0, 0, 1, 1], [], []>} : vector<16x32xf32>, vector<32x1xf32>, vector<16x1xf32> -> vector<16x1xf32>
    %c0_3 = arith.constant 0 : index
    %3 = memref.load %arg4[%c0_3] : memref<1xf32, #tpu.memory_space<smem>>
    %4 = vector.broadcast %3 : f32 to vector<16x1xf32>
    %5 = arith.mulf %2, %4 : vector<16x1xf32>
    %c0_4 = arith.constant 0 : index
    %c0_5 = arith.constant 0 : index
    %6 = vector.load %arg3[%c0_4, %c0_5] : memref<16x1xf32, #tpu.memory_space<vmem>>, vector<16x1xf32>
    %7 = arith.addf %5, %6 : vector<16x1xf32>
    %c0_6 = arith.constant 0 : index
    %c0_7 = arith.constant 0 : index
    %8 = vector.load %arg5[%c0_6, %c0_7] : memref<16x1xf32, #tpu.memory_space<vmem>>, vector<16x1xf32>
    tpu.vector_store %arg5[%c0_6, %c0_7], %7 {strides = array<i32>} : memref<16x1xf32, #tpu.memory_space<vmem>>, vector<16x1xf32>,
    return
  }
  func.func @transform_0(%arg0: i32) -> (i32, i32) {
    %c0_i32 = arith.constant 0 : i32
    %c0_i32_0 = arith.constant 0 : i32
    return %arg0, %c0_i32 : i32, i32
  }
  func.func @transform_1(%arg0: i32) -> (i32, i32) {
    %c0_i32 = arith.constant 0 : i32
    %c0_i32_0 = arith.constant 0 : i32
    %c0_i32_1 = arith.constant 0 : i32
    return %c0_i32, %c0_i32_0 : i32, i32
  }
  func.func @transform_2(%arg0: i32) -> (i32, i32) {
    %c0_i32 = arith.constant 0 : i32
    %c0_i32_0 = arith.constant 0 : i32
    return %arg0, %c0_i32 : i32, i32
  }
  func.func @transform_3(%arg0: i32) -> i32 {
    %c0_i32 = arith.constant 0 : i32
    %c0_i32_0 = arith.constant 0 : i32
    return %c0_i32 : i32
  }
  func.func @transform_4(%arg0: i32) -> (i32, i32) {
    %c0_i32 = arith.constant 0 : i32
    %c0_i32_0 = arith.constant 0 : i32
    return %arg0, %c0_i32 : i32, i32
  }
}

module attributes {stable_mosaic.version = 11 : i64} {
  func.func @_gather_scale_kernel(%arg0: i32, %arg1: memref<8xi32, #tpu.memory_space<smem>>, %arg2: memref<8x1xf32, #tpu.memory_space<vmem>>, %arg3: memref<16x32xf32, #tpu.memory_space<any>>, %arg4: memref<8x32xf32, #tpu.memory_space<vmem>>, %arg5: memref<8x32xf32, #tpu.memory_space<vmem>>, %arg6: memref<8x!tpu.dma_semaphore, #tpu.memory_space<semaphore_mem>>) attributes {dimension_semantics = [#tpu.dimension_semantics<arbitrary>], iteration_bounds = array<i64: 1>, scalar_prefetch = 1 : i64, scratch_operands = 2 : i64, tpu.core_type = #tpu.core_type<tc>, window_params = [{transform_indices = @transform_0, window_bounds = array<i64: 8, 1>}, {}, {transform_indices = @transform_2, window_bounds = array<i64: 8, 32>}]} {
    %c8_i32 = arith.constant 8 : i32
    %0 = arith.muli %arg0, %c8_i32 : i32
    %c0_i32 = arith.constant 0 : i32
    %1 = arith.addi %0, %c0_i32 : i32
    %2 = arith.index_cast %1 : i32 to index
    %3 = memref.load %arg1[%2] : memref<8xi32, #tpu.memory_space<smem>>
    %c0_i32_0 = arith.constant 0 : i32
    %c0_i32_1 = arith.constant 0 : i32
    %4 = tpu.memref_slice %arg3[%3, %c0_i32_1] : memref<16x32xf32, #tpu.memory_space<any>> -> memref<1x32xf32, #tpu.memory_space<any>>
    %c0_i32_2 = arith.constant 0 : i32
    %c0_i32_3 = arith.constant 0 : i32
    %5 = tpu.memref_slice %arg5[%c0_i32_2, %c0_i32_3] : memref<8x32xf32, #tpu.memory_space<vmem>> -> memref<1x32xf32, #tpu.memory_space<vmem>>
    %6 = tpu.memref_slice %arg6[%c0_i32_0] : memref<8x!tpu.dma_semaphore, #tpu.memory_space<semaphore_mem>> -> memref<1x!tpu.dma_semaphore, #tpu.memory_space<semaphore_mem>>
    %7 = tpu.memref_squeeze %6 : memref<1x!tpu.dma_semaphore, #tpu.memory_space<semaphore_mem>> -> memref<!tpu.dma_semaphore, #tpu.memory_space<semaphore_mem>>
    tpu.enqueue_dma source(%4 : memref<1x32xf32, #tpu.memory_space<any>>) target(%5 : memref<1x32xf32, #tpu.memory_space<vmem>>) target_semaphore(%7 : memref<!tpu.dma_semaphore, #tpu.memory_space<semaphore_mem>>)
    %c1_i32 = arith.constant 1 : i32
    %8 = arith.addi %0, %c1_i32 : i32
    %9 = arith.index_cast %8 : i32 to index
    %10 = memref.load %arg1[%9] : memref<8xi32, #tpu.memory_space<smem>>
    %c1_i32_4 = arith.constant 1 : i32
    %c0_i32_5 = arith.constant 0 : i32
    %11 = tpu.memref_slice %arg3[%10, %c0_i32_5] : memref<16x32xf32, #tpu.memory_space<any>> -> memref<1x32xf32, #tpu.memory_space<any>>
    %c1_i32_6 = arith.constant 1 : i32
    %c0_i32_7 = arith.constant 0 : i32
    %12 = tpu.memref_slice %arg5[%c1_i32_6, %c0_i32_7] : memref<8x32xf32, #tpu.memory_space<vmem>> -> memref<1x32xf32, #tpu.memory_space<vmem>>
    %13 = tpu.memref_slice %arg6[%c1_i32_4] : memref<8x!tpu.dma_semaphore, #tpu.memory_space<semaphore_mem>> -> memref<1x!tpu.dma_semaphore, #tpu.memory_space<semaphore_mem>>
    %14 = tpu.memref_squeeze %13 : memref<1x!tpu.dma_semaphore, #tpu.memory_space<semaphore_mem>> -> memref<!tpu.dma_semaphore, #tpu.memory_space<semaphore_mem>>
    tpu.enqueue_dma source(%11 : memref<1x32xf32, #tpu.memory_space<any>>) target(%12 : memref<1x32xf32, #tpu.memory_space<vmem>>) target_semaphore(%14 : memref<!tpu.dma_semaphore, #tpu.memory_space<semaphore_mem>>)
    %c2_i32 = arith.constant 2 : i32
    %15 = arith.addi %0, %c2_i32 : i32
    %16 = arith.index_cast %15 : i32 to index
    %17 = memref.load %arg1[%16] : memref<8xi32, #tpu.memory_space<smem>>
    %c2_i32_8 = arith.constant 2 : i32
    %c0_i32_9 = arith.constant 0 : i32
    %18 = tpu.memref_slice %arg3[%17, %c0_i32_9] : memref<16x32xf32, #tpu.memory_space<any>> -> memref<1x32xf32, #tpu.memory_space<any>>
    %c2_i32_10 = arith.constant 2 : i32
    %c0_i32_11 = arith.constant 0 : i32
    %19 = tpu.memref_slice %arg5[%c2_i32_10, %c0_i32_11] : memref<8x32xf32, #tpu.memory_space<vmem>> -> memref<1x32xf32, #tpu.memory_space<vmem>>
    %20 = tpu.memref_slice %arg6[%c2_i32_8] : memref<8x!tpu.dma_semaphore, #tpu.memory_space<semaphore_mem>> -> memref<1x!tpu.dma_semaphore, #tpu.memory_space<semaphore_mem>>
    %21 = tpu.memref_squeeze %20 : memref<1x!tpu.dma_semaphore, #tpu.memory_space<semaphore_mem>> -> memref<!tpu.dma_semaphore, #tpu.memory_space<semaphore_mem>>
    tpu.enqueue_dma source(%18 : memref<1x32xf32, #tpu.memory_space<any>>) target(%19 : memref<1x32xf32, #tpu.memory_space<vmem>>) target_semaphore(%21 : memref<!tpu.dma_semaphore, #tpu.memory_space<semaphore_mem>>)
    %c3_i32 = arith.constant 3 : i32
    %22 = arith.addi %0, %c3_i32 : i32
    %23 = arith.index_cast %22 : i32 to index
    %24 = memref.load %arg1[%23] : memref<8xi32, #tpu.memory_space<smem>>
    %c3_i32_12 = arith.constant 3 : i32
    %c0_i32_13 = arith.constant 0 : i32
    %25 = tpu.memref_slice %arg3[%24, %c0_i32_13] : memref<16x32xf32, #tpu.memory_space<any>> -> memref<1x32xf32, #tpu.memory_space<any>>
    %c3_i32_14 = arith.constant 3 : i32
    %c0_i32_15 = arith.constant 0 : i32
    %26 = tpu.memref_slice %arg5[%c3_i32_14, %c0_i32_15] : memref<8x32xf32, #tpu.memory_space<vmem>> -> memref<1x32xf32, #tpu.memory_space<vmem>>
    %27 = tpu.memref_slice %arg6[%c3_i32_12] : memref<8x!tpu.dma_semaphore, #tpu.memory_space<semaphore_mem>> -> memref<1x!tpu.dma_semaphore, #tpu.memory_space<semaphore_mem>>
    %28 = tpu.memref_squeeze %27 : memref<1x!tpu.dma_semaphore, #tpu.memory_space<semaphore_mem>> -> memref<!tpu.dma_semaphore, #tpu.memory_space<semaphore_mem>>
    tpu.enqueue_dma source(%25 : memref<1x32xf32, #tpu.memory_space<any>>) target(%26 : memref<1x32xf32, #tpu.memory_space<vmem>>) target_semaphore(%28 : memref<!tpu.dma_semaphore, #tpu.memory_space<semaphore_mem>>)
    %c4_i32 = arith.constant 4 : i32
    %29 = arith.addi %0, %c4_i32 : i32
    %30 = arith.index_cast %29 : i32 to index
    %31 = memref.load %arg1[%30] : memref<8xi32, #tpu.memory_space<smem>>
    %c4_i32_16 = arith.constant 4 : i32
    %c0_i32_17 = arith.constant 0 : i32
    %32 = tpu.memref_slice %arg3[%31, %c0_i32_17] : memref<16x32xf32, #tpu.memory_space<any>> -> memref<1x32xf32, #tpu.memory_space<any>>
    %c4_i32_18 = arith.constant 4 : i32
    %c0_i32_19 = arith.constant 0 : i32
    %33 = tpu.memref_slice %arg5[%c4_i32_18, %c0_i32_19] : memref<8x32xf32, #tpu.memory_space<vmem>> -> memref<1x32xf32, #tpu.memory_space<vmem>>
    %34 = tpu.memref_slice %arg6[%c4_i32_16] : memref<8x!tpu.dma_semaphore, #tpu.memory_space<semaphore_mem>> -> memref<1x!tpu.dma_semaphore, #tpu.memory_space<semaphore_mem>>
    %35 = tpu.memref_squeeze %34 : memref<1x!tpu.dma_semaphore, #tpu.memory_space<semaphore_mem>> -> memref<!tpu.dma_semaphore, #tpu.memory_space<semaphore_mem>>
    tpu.enqueue_dma source(%32 : memref<1x32xf32, #tpu.memory_space<any>>) target(%33 : memref<1x32xf32, #tpu.memory_space<vmem>>) target_semaphore(%35 : memref<!tpu.dma_semaphore, #tpu.memory_space<semaphore_mem>>)
    %c5_i32 = arith.constant 5 : i32
    %36 = arith.addi %0, %c5_i32 : i32
    %37 = arith.index_cast %36 : i32 to index
    %38 = memref.load %arg1[%37] : memref<8xi32, #tpu.memory_space<smem>>
    %c5_i32_20 = arith.constant 5 : i32
    %c0_i32_21 = arith.constant 0 : i32
    %39 = tpu.memref_slice %arg3[%38, %c0_i32_21] : memref<16x32xf32, #tpu.memory_space<any>> -> memref<1x32xf32, #tpu.memory_space<any>>
    %c5_i32_22 = arith.constant 5 : i32
    %c0_i32_23 = arith.constant 0 : i32
    %40 = tpu.memref_slice %arg5[%c5_i32_22, %c0_i32_23] : memref<8x32xf32, #tpu.memory_space<vmem>> -> memref<1x32xf32, #tpu.memory_space<vmem>>
    %41 = tpu.memref_slice %arg6[%c5_i32_20] : memref<8x!tpu.dma_semaphore, #tpu.memory_space<semaphore_mem>> -> memref<1x!tpu.dma_semaphore, #tpu.memory_space<semaphore_mem>>
    %42 = tpu.memref_squeeze %41 : memref<1x!tpu.dma_semaphore, #tpu.memory_space<semaphore_mem>> -> memref<!tpu.dma_semaphore, #tpu.memory_space<semaphore_mem>>
    tpu.enqueue_dma source(%39 : memref<1x32xf32, #tpu.memory_space<any>>) target(%40 : memref<1x32xf32, #tpu.memory_space<vmem>>) target_semaphore(%42 : memref<!tpu.dma_semaphore, #tpu.memory_space<semaphore_mem>>)
    %c6_i32 = arith.constant 6 : i32
    %43 = arith.addi %0, %c6_i32 : i32
    %44 = arith.index_cast %43 : i32 to index
    %45 = memref.load %arg1[%44] : memref<8xi32, #tpu.memory_space<smem>>
    %c6_i32_24 = arith.constant 6 : i32
    %c0_i32_25 = arith.constant 0 : i32
    %46 = tpu.memref_slice %arg3[%45, %c0_i32_25] : memref<16x32xf32, #tpu.memory_space<any>> -> memref<1x32xf32, #tpu.memory_space<any>>
    %c6_i32_26 = arith.constant 6 : i32
    %c0_i32_27 = arith.constant 0 : i32
    %47 = tpu.memref_slice %arg5[%c6_i32_26, %c0_i32_27] : memref<8x32xf32, #tpu.memory_space<vmem>> -> memref<1x32xf32, #tpu.memory_space<vmem>>
    %48 = tpu.memref_slice %arg6[%c6_i32_24] : memref<8x!tpu.dma_semaphore, #tpu.memory_space<semaphore_mem>> -> memref<1x!tpu.dma_semaphore, #tpu.memory_space<semaphore_mem>>
    %49 = tpu.memref_squeeze %48 : memref<1x!tpu.dma_semaphore, #tpu.memory_space<semaphore_mem>> -> memref<!tpu.dma_semaphore, #tpu.memory_space<semaphore_mem>>
    tpu.enqueue_dma source(%46 : memref<1x32xf32, #tpu.memory_space<any>>) target(%47 : memref<1x32xf32, #tpu.memory_space<vmem>>) target_semaphore(%49 : memref<!tpu.dma_semaphore, #tpu.memory_space<semaphore_mem>>)
    %c7_i32 = arith.constant 7 : i32
    %50 = arith.addi %0, %c7_i32 : i32
    %51 = arith.index_cast %50 : i32 to index
    %52 = memref.load %arg1[%51] : memref<8xi32, #tpu.memory_space<smem>>
    %c7_i32_28 = arith.constant 7 : i32
    %c0_i32_29 = arith.constant 0 : i32
    %53 = tpu.memref_slice %arg3[%52, %c0_i32_29] : memref<16x32xf32, #tpu.memory_space<any>> -> memref<1x32xf32, #tpu.memory_space<any>>
    %c7_i32_30 = arith.constant 7 : i32
    %c0_i32_31 = arith.constant 0 : i32
    %54 = tpu.memref_slice %arg5[%c7_i32_30, %c0_i32_31] : memref<8x32xf32, #tpu.memory_space<vmem>> -> memref<1x32xf32, #tpu.memory_space<vmem>>
    %55 = tpu.memref_slice %arg6[%c7_i32_28] : memref<8x!tpu.dma_semaphore, #tpu.memory_space<semaphore_mem>> -> memref<1x!tpu.dma_semaphore, #tpu.memory_space<semaphore_mem>>
    %56 = tpu.memref_squeeze %55 : memref<1x!tpu.dma_semaphore, #tpu.memory_space<semaphore_mem>> -> memref<!tpu.dma_semaphore, #tpu.memory_space<semaphore_mem>>
    tpu.enqueue_dma source(%53 : memref<1x32xf32, #tpu.memory_space<any>>) target(%54 : memref<1x32xf32, #tpu.memory_space<vmem>>) target_semaphore(%56 : memref<!tpu.dma_semaphore, #tpu.memory_space<semaphore_mem>>)
    %c0_i32_32 = arith.constant 0 : i32
    %c0_i32_33 = arith.constant 0 : i32
    %57 = tpu.memref_slice %arg3[%3, %c0_i32_33] : memref<16x32xf32, #tpu.memory_space<any>> -> memref<1x32xf32, #tpu.memory_space<any>>
    %c0_i32_34 = arith.constant 0 : i32
    %c0_i32_35 = arith.constant 0 : i32
    %58 = tpu.memref_slice %arg5[%c0_i32_34, %c0_i32_35] : memref<8x32xf32, #tpu.memory_space<vmem>> -> memref<1x32xf32, #tpu.memory_space<vmem>>
    %59 = tpu.memref_slice %arg6[%c0_i32_32] : memref<8x!tpu.dma_semaphore, #tpu.memory_space<semaphore_mem>> -> memref<1x!tpu.dma_semaphore, #tpu.memory_space<semaphore_mem>>
    %60 = tpu.memref_squeeze %59 : memref<1x!tpu.dma_semaphore, #tpu.memory_space<semaphore_mem>> -> memref<!tpu.dma_semaphore, #tpu.memory_space<semaphore_mem>>
    tpu.wait_dma2 semaphore(%60 : memref<!tpu.dma_semaphore, #tpu.memory_space<semaphore_mem>>) src(%57 : memref<1x32xf32, #tpu.memory_space<any>>) dst(%58 : memref<1x32xf32, #tpu.memory_space<vmem>>)
    %c1_i32_36 = arith.constant 1 : i32
    %c0_i32_37 = arith.constant 0 : i32
    %61 = tpu.memref_slice %arg3[%10, %c0_i32_37] : memref<16x32xf32, #tpu.memory_space<any>> -> memref<1x32xf32, #tpu.memory_space<any>>
    %c1_i32_38 = arith.constant 1 : i32
    %c0_i32_39 = arith.constant 0 : i32
    %62 = tpu.memref_slice %arg5[%c1_i32_38, %c0_i32_39] : memref<8x32xf32, #tpu.memory_space<vmem>> -> memref<1x32xf32, #tpu.memory_space<vmem>>
    %63 = tpu.memref_slice %arg6[%c1_i32_36] : memref<8x!tpu.dma_semaphore, #tpu.memory_space<semaphore_mem>> -> memref<1x!tpu.dma_semaphore, #tpu.memory_space<semaphore_mem>>
    %64 = tpu.memref_squeeze %63 : memref<1x!tpu.dma_semaphore, #tpu.memory_space<semaphore_mem>> -> memref<!tpu.dma_semaphore, #tpu.memory_space<semaphore_mem>>
    tpu.wait_dma2 semaphore(%64 : memref<!tpu.dma_semaphore, #tpu.memory_space<semaphore_mem>>) src(%61 : memref<1x32xf32, #tpu.memory_space<any>>) dst(%62 : memref<1x32xf32, #tpu.memory_space<vmem>>)
    %c2_i32_40 = arith.constant 2 : i32
    %c0_i32_41 = arith.constant 0 : i32
    %65 = tpu.memref_slice %arg3[%17, %c0_i32_41] : memref<16x32xf32, #tpu.memory_space<any>> -> memref<1x32xf32, #tpu.memory_space<any>>
    %c2_i32_42 = arith.constant 2 : i32
    %c0_i32_43 = arith.constant 0 : i32
    %66 = tpu.memref_slice %arg5[%c2_i32_42, %c0_i32_43] : memref<8x32xf32, #tpu.memory_space<vmem>> -> memref<1x32xf32, #tpu.memory_space<vmem>>
    %67 = tpu.memref_slice %arg6[%c2_i32_40] : memref<8x!tpu.dma_semaphore, #tpu.memory_space<semaphore_mem>> -> memref<1x!tpu.dma_semaphore, #tpu.memory_space<semaphore_mem>>
    %68 = tpu.memref_squeeze %67 : memref<1x!tpu.dma_semaphore, #tpu.memory_space<semaphore_mem>> -> memref<!tpu.dma_semaphore, #tpu.memory_space<semaphore_mem>>
    tpu.wait_dma2 semaphore(%68 : memref<!tpu.dma_semaphore, #tpu.memory_space<semaphore_mem>>) src(%65 : memref<1x32xf32, #tpu.memory_space<any>>) dst(%66 : memref<1x32xf32, #tpu.memory_space<vmem>>)
    %c3_i32_44 = arith.constant 3 : i32
    %c0_i32_45 = arith.constant 0 : i32
    %69 = tpu.memref_slice %arg3[%24, %c0_i32_45] : memref<16x32xf32, #tpu.memory_space<any>> -> memref<1x32xf32, #tpu.memory_space<any>>
    %c3_i32_46 = arith.constant 3 : i32
    %c0_i32_47 = arith.constant 0 : i32
    %70 = tpu.memref_slice %arg5[%c3_i32_46, %c0_i32_47] : memref<8x32xf32, #tpu.memory_space<vmem>> -> memref<1x32xf32, #tpu.memory_space<vmem>>
    %71 = tpu.memref_slice %arg6[%c3_i32_44] : memref<8x!tpu.dma_semaphore, #tpu.memory_space<semaphore_mem>> -> memref<1x!tpu.dma_semaphore, #tpu.memory_space<semaphore_mem>>
    %72 = tpu.memref_squeeze %71 : memref<1x!tpu.dma_semaphore, #tpu.memory_space<semaphore_mem>> -> memref<!tpu.dma_semaphore, #tpu.memory_space<semaphore_mem>>
    tpu.wait_dma2 semaphore(%72 : memref<!tpu.dma_semaphore, #tpu.memory_space<semaphore_mem>>) src(%69 : memref<1x32xf32, #tpu.memory_space<any>>) dst(%70 : memref<1x32xf32, #tpu.memory_space<vmem>>)
    %c4_i32_48 = arith.constant 4 : i32
    %c0_i32_49 = arith.constant 0 : i32
    %73 = tpu.memref_slice %arg3[%31, %c0_i32_49] : memref<16x32xf32, #tpu.memory_space<any>> -> memref<1x32xf32, #tpu.memory_space<any>>
    %c4_i32_50 = arith.constant 4 : i32
    %c0_i32_51 = arith.constant 0 : i32
    %74 = tpu.memref_slice %arg5[%c4_i32_50, %c0_i32_51] : memref<8x32xf32, #tpu.memory_space<vmem>> -> memref<1x32xf32, #tpu.memory_space<vmem>>
    %75 = tpu.memref_slice %arg6[%c4_i32_48] : memref<8x!tpu.dma_semaphore, #tpu.memory_space<semaphore_mem>> -> memref<1x!tpu.dma_semaphore, #tpu.memory_space<semaphore_mem>>
    %76 = tpu.memref_squeeze %75 : memref<1x!tpu.dma_semaphore, #tpu.memory_space<semaphore_mem>> -> memref<!tpu.dma_semaphore, #tpu.memory_space<semaphore_mem>>
    tpu.wait_dma2 semaphore(%76 : memref<!tpu.dma_semaphore, #tpu.memory_space<semaphore_mem>>) src(%73 : memref<1x32xf32, #tpu.memory_space<any>>) dst(%74 : memref<1x32xf32, #tpu.memory_space<vmem>>)
    %c5_i32_52 = arith.constant 5 : i32
    %c0_i32_53 = arith.constant 0 : i32
    %77 = tpu.memref_slice %arg3[%38, %c0_i32_53] : memref<16x32xf32, #tpu.memory_space<any>> -> memref<1x32xf32, #tpu.memory_space<any>>
    %c5_i32_54 = arith.constant 5 : i32
    %c0_i32_55 = arith.constant 0 : i32
    %78 = tpu.memref_slice %arg5[%c5_i32_54, %c0_i32_55] : memref<8x32xf32, #tpu.memory_space<vmem>> -> memref<1x32xf32, #tpu.memory_space<vmem>>
    %79 = tpu.memref_slice %arg6[%c5_i32_52] : memref<8x!tpu.dma_semaphore, #tpu.memory_space<semaphore_mem>> -> memref<1x!tpu.dma_semaphore, #tpu.memory_space<semaphore_mem>>
    %80 = tpu.memref_squeeze %79 : memref<1x!tpu.dma_semaphore, #tpu.memory_space<semaphore_mem>> -> memref<!tpu.dma_semaphore, #tpu.memory_space<semaphore_mem>>
    tpu.wait_dma2 semaphore(%80 : memref<!tpu.dma_semaphore, #tpu.memory_space<semaphore_mem>>) src(%77 : memref<1x32xf32, #tpu.memory_space<any>>) dst(%78 : memref<1x32xf32, #tpu.memory_space<vmem>>)
    %c6_i32_56 = arith.constant 6 : i32
    %c0_i32_57 = arith.constant 0 : i32
    %81 = tpu.memref_slice %arg3[%45, %c0_i32_57] : memref<16x32xf32, #tpu.memory_space<any>> -> memref<1x32xf32, #tpu.memory_space<any>>
    %c6_i32_58 = arith.constant 6 : i32
    %c0_i32_59 = arith.constant 0 : i32
    %82 = tpu.memref_slice %arg5[%c6_i32_58, %c0_i32_59] : memref<8x32xf32, #tpu.memory_space<vmem>> -> memref<1x32xf32, #tpu.memory_space<vmem>>
    %83 = tpu.memref_slice %arg6[%c6_i32_56] : memref<8x!tpu.dma_semaphore, #tpu.memory_space<semaphore_mem>> -> memref<1x!tpu.dma_semaphore, #tpu.memory_space<semaphore_mem>>
    %84 = tpu.memref_squeeze %83 : memref<1x!tpu.dma_semaphore, #tpu.memory_space<semaphore_mem>> -> memref<!tpu.dma_semaphore, #tpu.memory_space<semaphore_mem>>
    tpu.wait_dma2 semaphore(%84 : memref<!tpu.dma_semaphore, #tpu.memory_space<semaphore_mem>>) src(%81 : memref<1x32xf32, #tpu.memory_space<any>>) dst(%82 : memref<1x32xf32, #tpu.memory_space<vmem>>)
    %c7_i32_60 = arith.constant 7 : i32
    %c0_i32_61 = arith.constant 0 : i32
    %85 = tpu.memref_slice %arg3[%52, %c0_i32_61] : memref<16x32xf32, #tpu.memory_space<any>> -> memref<1x32xf32, #tpu.memory_space<any>>
    %c7_i32_62 = arith.constant 7 : i32
    %c0_i32_63 = arith.constant 0 : i32
    %86 = tpu.memref_slice %arg5[%c7_i32_62, %c0_i32_63] : memref<8x32xf32, #tpu.memory_space<vmem>> -> memref<1x32xf32, #tpu.memory_space<vmem>>
    %87 = tpu.memref_slice %arg6[%c7_i32_60] : memref<8x!tpu.dma_semaphore, #tpu.memory_space<semaphore_mem>> -> memref<1x!tpu.dma_semaphore, #tpu.memory_space<semaphore_mem>>
    %88 = tpu.memref_squeeze %87 : memref<1x!tpu.dma_semaphore, #tpu.memory_space<semaphore_mem>> -> memref<!tpu.dma_semaphore, #tpu.memory_space<semaphore_mem>>
    tpu.wait_dma2 semaphore(%88 : memref<!tpu.dma_semaphore, #tpu.memory_space<semaphore_mem>>) src(%85 : memref<1x32xf32, #tpu.memory_space<any>>) dst(%86 : memref<1x32xf32, #tpu.memory_space<vmem>>)
    %c0 = arith.constant 0 : index
    %c0_64 = arith.constant 0 : index
    %89 = vector.load %arg5[%c0, %c0_64] : memref<8x32xf32, #tpu.memory_space<vmem>>, vector<8x32xf32>
    %c0_65 = arith.constant 0 : index
    %c0_66 = arith.constant 0 : index
    %90 = vector.load %arg2[%c0_65, %c0_66] : memref<8x1xf32, #tpu.memory_space<vmem>>, vector<8x1xf32>
    %91 = vector.broadcast %90 : vector<8x1xf32> to vector<8x32xf32>
    %92 = arith.mulf %89, %91 : vector<8x32xf32>
    %c0_67 = arith.constant 0 : index
    %c0_68 = arith.constant 0 : index
    %93 = vector.load %arg4[%c0_67, %c0_68] : memref<8x32xf32, #tpu.memory_space<vmem>>, vector<8x32xf32>
    tpu.vector_store %arg4[%c0_67, %c0_68], %92 {strides = array<i32>} : memref<8x32xf32, #tpu.memory_space<vmem>>, vector<8x32xf32>,
    return
  }
  func.func @transform_0(%arg0: i32, %arg1: memref<8xi32, #tpu.memory_space<smem>>) -> (i32, i32) {
    %c0_i32 = arith.constant 0 : i32
    %c0_i32_0 = arith.constant 0 : i32
    return %arg0, %c0_i32 : i32, i32
  }
  func.func @transform_2(%arg0: i32, %arg1: memref<8xi32, #tpu.memory_space<smem>>) -> (i32, i32) {
    %c0_i32 = arith.constant 0 : i32
    %c0_i32_0 = arith.constant 0 : i32
    return %arg0, %c0_i32 : i32, i32
  }
}

module attributes {stable_mosaic.version = 11 : i64} {
  func.func @_fused_gru_kernel(%arg0: i32, %arg1: memref<32x8xf32, #tpu.memory_space<vmem>>, %arg2: memref<32x8xf32, #tpu.memory_space<vmem>>, %arg3: memref<32x32xf32, #tpu.memory_space<vmem>>, %arg4: memref<32x32xf32, #tpu.memory_space<vmem>>, %arg5: memref<32x8xf32, #tpu.memory_space<vmem>>, %arg6: memref<32x32xf32, #tpu.memory_space<vmem>>, %arg7: memref<32x32xf32, #tpu.memory_space<vmem>>, %arg8: memref<32x8xf32, #tpu.memory_space<vmem>>, %arg9: memref<32x32xf32, #tpu.memory_space<vmem>>, %arg10: memref<32x32xf32, #tpu.memory_space<vmem>>, %arg11: memref<32x8xf32, #tpu.memory_space<vmem>>, %arg12: memref<32x8xf32, #tpu.memory_space<vmem>>) attributes {dimension_semantics = [#tpu.dimension_semantics<arbitrary>], iteration_bounds = array<i64: 1>, scalar_prefetch = 0 : i64, scratch_operands = 0 : i64, tpu.core_type = #tpu.core_type<tc>, window_params = [{pipeline_mode = #tpu.pipeline_mode<synchronous>, transform_indices = @transform_0, window_bounds = array<i64: 32, 8>}, {pipeline_mode = #tpu.pipeline_mode<synchronous>, transform_indices = @transform_1, window_bounds = array<i64: 32, 8>}, {pipeline_mode = #tpu.pipeline_mode<synchronous>, transform_indices = @transform_2, window_bounds = array<i64: 32, 32>}, {pipeline_mode = #tpu.pipeline_mode<synchronous>, transform_indices = @transform_3, window_bounds = array<i64: 32, 32>}, {pipeline_mode = #tpu.pipeline_mode<synchronous>, transform_indices = @transform_4, window_bounds = array<i64: 32, 8>}, {pipeline_mode = #tpu.pipeline_mode<synchronous>, transform_indices = @transform_5, window_bounds = array<i64: 32, 32>}, {pipeline_mode = #tpu.pipeline_mode<synchronous>, transform_indices = @transform_6, window_bounds = array<i64: 32, 32>}, {pipeline_mode = #tpu.pipeline_mode<synchronous>, transform_indices = @transform_7, window_bounds = array<i64: 32, 8>}, {pipeline_mode = #tpu.pipeline_mode<synchronous>, transform_indices = @transform_8, window_bounds = array<i64: 32, 32>}, {pipeline_mode = #tpu.pipeline_mode<synchronous>, transform_indices = @transform_9, window_bounds = array<i64: 32, 32>}, {pipeline_mode = #tpu.pipeline_mode<synchronous>, transform_indices = @transform_10, window_bounds = array<i64: 32, 8>}, {pipeline_mode = #tpu.pipeline_mode<synchronous>, transform_indices = @transform_11, window_bounds = array<i64: 32, 8>}]} {
    %c0 = arith.constant 0 : index
    %c0_0 = arith.constant 0 : index
    %0 = vector.load %arg1[%c0, %c0_0] : memref<32x8xf32, #tpu.memory_space<vmem>>, vector<32x8xf32>
    %c0_1 = arith.constant 0 : index
    %c0_2 = arith.constant 0 : index
    %1 = vector.load %arg2[%c0_1, %c0_2] : memref<32x8xf32, #tpu.memory_space<vmem>>, vector<32x8xf32>
    %c0_3 = arith.constant 0 : index
    %c0_4 = arith.constant 0 : index
    %2 = vector.load %arg3[%c0_3, %c0_4] : memref<32x32xf32, #tpu.memory_space<vmem>>, vector<32x32xf32>
    %cst = arith.constant dense<0.000000e+00> : vector<32x8xf32>
    %3 = tpu.matmul %2, %0, %cst {dimension_numbers = #tpu.dot_dimension_numbers<[1], [0], [0], [1], [0, 0, 1, 1], [], []>} : vector<32x32xf32>, vector<32x8xf32>, vector<32x8xf32> -> vector<32x8xf32>
    %c0_5 = arith.constant 0 : index
    %c0_6 = arith.constant 0 : index
    %4 = vector.load %arg4[%c0_5, %c0_6] : memref<32x32xf32, #tpu.memory_space<vmem>>, vector<32x32xf32>
    %cst_7 = arith.constant dense<0.000000e+00> : vector<32x8xf32>
    %5 = tpu.matmul %4, %1, %cst_7 {dimension_numbers = #tpu.dot_dimension_numbers<[1], [0], [0], [1], [0, 0, 1, 1], [], []>} : vector<32x32xf32>, vector<32x8xf32>, vector<32x8xf32> -> vector<32x8xf32>
    %6 = arith.addf %3, %5 : vector<32x8xf32>
    %c0_8 = arith.constant 0 : index
    %c0_9 = arith.constant 0 : index
    %7 = vector.load %arg5[%c0_8, %c0_9] : memref<32x8xf32, #tpu.memory_space<vmem>>, vector<32x8xf32>
    %8 = arith.addf %6, %7 : vector<32x8xf32>
    %cst_10 = arith.constant 0.000000e+00 : f32
    %9 = vector.broadcast %cst_10 : f32 to vector<32x8xf32>
    %10 = arith.subf %9, %8 : vector<32x8xf32>
    %11 = math.exp %10 : vector<32x8xf32>
    %cst_11 = arith.constant 1.000000e+00 : f32
    %12 = vector.broadcast %cst_11 : f32 to vector<32x8xf32>
    %13 = arith.addf %12, %11 : vector<32x8xf32>
    %cst_12 = arith.constant 1.000000e+00 : f32
    %14 = vector.broadcast %cst_12 : f32 to vector<32x8xf32>
    %15 = arith.divf %14, %13 : vector<32x8xf32>
    %c0_13 = arith.constant 0 : index
    %c0_14 = arith.constant 0 : index
    %16 = vector.load %arg6[%c0_13, %c0_14] : memref<32x32xf32, #tpu.memory_space<vmem>>, vector<32x32xf32>
    %cst_15 = arith.constant dense<0.000000e+00> : vector<32x8xf32>
    %17 = tpu.matmul %16, %0, %cst_15 {dimension_numbers = #tpu.dot_dimension_numbers<[1], [0], [0], [1], [0, 0, 1, 1], [], []>} : vector<32x32xf32>, vector<32x8xf32>, vector<32x8xf32> -> vector<32x8xf32>
    %c0_16 = arith.constant 0 : index
    %c0_17 = arith.constant 0 : index
    %18 = vector.load %arg7[%c0_16, %c0_17] : memref<32x32xf32, #tpu.memory_space<vmem>>, vector<32x32xf32>
    %cst_18 = arith.constant dense<0.000000e+00> : vector<32x8xf32>
    %19 = tpu.matmul %18, %1, %cst_18 {dimension_numbers = #tpu.dot_dimension_numbers<[1], [0], [0], [1], [0, 0, 1, 1], [], []>} : vector<32x32xf32>, vector<32x8xf32>, vector<32x8xf32> -> vector<32x8xf32>
    %20 = arith.addf %17, %19 : vector<32x8xf32>
    %c0_19 = arith.constant 0 : index
    %c0_20 = arith.constant 0 : index
    %21 = vector.load %arg8[%c0_19, %c0_20] : memref<32x8xf32, #tpu.memory_space<vmem>>, vector<32x8xf32>
    %22 = arith.addf %20, %21 : vector<32x8xf32>
    %cst_21 = arith.constant 0.000000e+00 : f32
    %23 = vector.broadcast %cst_21 : f32 to vector<32x8xf32>
    %24 = arith.subf %23, %22 : vector<32x8xf32>
    %25 = math.exp %24 : vector<32x8xf32>
    %cst_22 = arith.constant 1.000000e+00 : f32
    %26 = vector.broadcast %cst_22 : f32 to vector<32x8xf32>
    %27 = arith.addf %26, %25 : vector<32x8xf32>
    %cst_23 = arith.constant 1.000000e+00 : f32
    %28 = vector.broadcast %cst_23 : f32 to vector<32x8xf32>
    %29 = arith.divf %28, %27 : vector<32x8xf32>
    %30 = arith.mulf %29, %1 : vector<32x8xf32>
    %c0_24 = arith.constant 0 : index
    %c0_25 = arith.constant 0 : index
    %31 = vector.load %arg9[%c0_24, %c0_25] : memref<32x32xf32, #tpu.memory_space<vmem>>, vector<32x32xf32>
    %cst_26 = arith.constant dense<0.000000e+00> : vector<32x8xf32>
    %32 = tpu.matmul %31, %0, %cst_26 {dimension_numbers = #tpu.dot_dimension_numbers<[1], [0], [0], [1], [0, 0, 1, 1], [], []>} : vector<32x32xf32>, vector<32x8xf32>, vector<32x8xf32> -> vector<32x8xf32>
    %c0_27 = arith.constant 0 : index
    %c0_28 = arith.constant 0 : index
    %33 = vector.load %arg10[%c0_27, %c0_28] : memref<32x32xf32, #tpu.memory_space<vmem>>, vector<32x32xf32>
    %cst_29 = arith.constant dense<0.000000e+00> : vector<32x8xf32>
    %34 = tpu.matmul %33, %30, %cst_29 {dimension_numbers = #tpu.dot_dimension_numbers<[1], [0], [0], [1], [0, 0, 1, 1], [], []>} : vector<32x32xf32>, vector<32x8xf32>, vector<32x8xf32> -> vector<32x8xf32>
    %35 = arith.addf %32, %34 : vector<32x8xf32>
    %c0_30 = arith.constant 0 : index
    %c0_31 = arith.constant 0 : index
    %36 = vector.load %arg11[%c0_30, %c0_31] : memref<32x8xf32, #tpu.memory_space<vmem>>, vector<32x8xf32>
    %37 = arith.addf %35, %36 : vector<32x8xf32>
    %38 = math.tanh %37 : vector<32x8xf32>
    %cst_32 = arith.constant 1.000000e+00 : f32
    %39 = vector.broadcast %cst_32 : f32 to vector<32x8xf32>
    %40 = arith.subf %39, %15 : vector<32x8xf32>
    %41 = arith.mulf %40, %1 : vector<32x8xf32>
    %42 = arith.mulf %15, %38 : vector<32x8xf32>
    %43 = arith.addf %41, %42 : vector<32x8xf32>
    %c0_33 = arith.constant 0 : index
    %c0_34 = arith.constant 0 : index
    %44 = vector.load %arg12[%c0_33, %c0_34] : memref<32x8xf32, #tpu.memory_space<vmem>>, vector<32x8xf32>
    tpu.vector_store %arg12[%c0_33, %c0_34], %43 {strides = array<i32>} : memref<32x8xf32, #tpu.memory_space<vmem>>, vector<32x8xf32>,
    return
  }
  func.func @transform_0(%arg0: i32) -> (i32, i32) {
    %c0_i32 = arith.constant 0 : i32
    %c0_i32_0 = arith.constant 0 : i32
    %c0_i32_1 = arith.constant 0 : i32
    return %c0_i32, %c0_i32_0 : i32, i32
  }
  func.func @transform_1(%arg0: i32) -> (i32, i32) {
    %c0_i32 = arith.constant 0 : i32
    %c0_i32_0 = arith.constant 0 : i32
    %c0_i32_1 = arith.constant 0 : i32
    return %c0_i32, %c0_i32_0 : i32, i32
  }
  func.func @transform_2(%arg0: i32) -> (i32, i32) {
    %c0_i32 = arith.constant 0 : i32
    %c0_i32_0 = arith.constant 0 : i32
    %c0_i32_1 = arith.constant 0 : i32
    return %c0_i32, %c0_i32_0 : i32, i32
  }
  func.func @transform_3(%arg0: i32) -> (i32, i32) {
    %c0_i32 = arith.constant 0 : i32
    %c0_i32_0 = arith.constant 0 : i32
    %c0_i32_1 = arith.constant 0 : i32
    return %c0_i32, %c0_i32_0 : i32, i32
  }
  func.func @transform_4(%arg0: i32) -> (i32, i32) {
    %c0_i32 = arith.constant 0 : i32
    %c0_i32_0 = arith.constant 0 : i32
    %c0_i32_1 = arith.constant 0 : i32
    return %c0_i32, %c0_i32_0 : i32, i32
  }
  func.func @transform_5(%arg0: i32) -> (i32, i32) {
    %c0_i32 = arith.constant 0 : i32
    %c0_i32_0 = arith.constant 0 : i32
    %c0_i32_1 = arith.constant 0 : i32
    return %c0_i32, %c0_i32_0 : i32, i32
  }
  func.func @transform_6(%arg0: i32) -> (i32, i32) {
    %c0_i32 = arith.constant 0 : i32
    %c0_i32_0 = arith.constant 0 : i32
    %c0_i32_1 = arith.constant 0 : i32
    return %c0_i32, %c0_i32_0 : i32, i32
  }
  func.func @transform_7(%arg0: i32) -> (i32, i32) {
    %c0_i32 = arith.constant 0 : i32
    %c0_i32_0 = arith.constant 0 : i32
    %c0_i32_1 = arith.constant 0 : i32
    return %c0_i32, %c0_i32_0 : i32, i32
  }
  func.func @transform_8(%arg0: i32) -> (i32, i32) {
    %c0_i32 = arith.constant 0 : i32
    %c0_i32_0 = arith.constant 0 : i32
    %c0_i32_1 = arith.constant 0 : i32
    return %c0_i32, %c0_i32_0 : i32, i32
  }
  func.func @transform_9(%arg0: i32) -> (i32, i32) {
    %c0_i32 = arith.constant 0 : i32
    %c0_i32_0 = arith.constant 0 : i32
    %c0_i32_1 = arith.constant 0 : i32
    return %c0_i32, %c0_i32_0 : i32, i32
  }
  func.func @transform_10(%arg0: i32) -> (i32, i32) {
    %c0_i32 = arith.constant 0 : i32
    %c0_i32_0 = arith.constant 0 : i32
    %c0_i32_1 = arith.constant 0 : i32
    return %c0_i32, %c0_i32_0 : i32, i32
  }
  func.func @transform_11(%arg0: i32) -> (i32, i32) {
    %c0_i32 = arith.constant 0 : i32
    %c0_i32_0 = arith.constant 0 : i32
    %c0_i32_1 = arith.constant 0 : i32
    return %c0_i32, %c0_i32_0 : i32, i32
  }
}

</mosaic_0001>

<llo_original>
// kernel: mat_gru_cell_forward.3
$region0: #{mat_gru_cell_forward.3}
  #allocation0 [shape = 'u32[]', space=smem, size = 0x4, offset = 0x4, fixed_abs, tag = 'smem constant byte address 0x4 - core index']
  #allocation1 [shape = 'u32[144,128]{1,0:T(1,128)}', space=vmem, size = 0x12000, scoped, tag = 'internal scratch']
  #allocation2 [shape = 'f32[1]{0:T(128)S(6)}', space=smem, size = 0x200, scoped, tag = 'scoped memory for mat_gru_cell_forward.3']
  %s0 = inlined_call_operand.vmem [shape: f32[16,32], index: 0, kind: input, shape index: {}]
  %s1 = inlined_call_operand.vmem [shape: f32[32,1], index: 1, kind: input, shape index: {}]
  %s2 = inlined_call_operand.vmem [shape: f32[16,1], index: 2, kind: input, shape index: {}]
  %s3 = inlined_call_operand.<no memory space> [shape: f32[1], index: 3, kind: input, shape index: {}]
  %s4 = inlined_call_operand.vmem [shape: f32[16,1], index: 4, kind: output, shape index: {}]
  %s5 = sld [smem:[#allocation0]]
  $region26: #{mat_gru_cell_forward.3} parent=0
    _
  %s7 = ssub.s32 1, %s5
  %s8 = scalar_select 0, %s7, %s5
  %9 = sst [smem:[#allocation2]] %s3
  // Predicated region
  $region2: #{mat_gru_cell_forward.3} parent=0 // pred_check
    _
  $region3: #{mat_gru_cell_forward.3} parent=0 // pred_check_branch
    %11 = sbr.rel (0) target = $region5
  $region4: #{mat_gru_cell_forward.3} parent=0 // pred_region
    _
  $region5: #{mat_gru_cell_forward.3} parent=0 // pred_fallthru
    _
  // Predicated region
  $region6: #{mat_gru_cell_forward.3} parent=0 // pred_check
    _
  $region7: #{mat_gru_cell_forward.3} parent=0 // pred_check_branch
    %13 = sbr.rel (0) target = $region9
  $region8: #{mat_gru_cell_forward.3} parent=0 // pred_region
    _
  $region9: #{mat_gru_cell_forward.3} parent=0 // pred_fallthru
    _
  // Predicated region
  $region10: #{mat_gru_cell_forward.3} parent=0 // pred_check
    _
  $region11: #{mat_gru_cell_forward.3} parent=0 // pred_check_branch
    %15 = sbr.rel (0) target = $region13
  $region12: #{mat_gru_cell_forward.3} parent=0 // pred_region
    _
  $region13: #{mat_gru_cell_forward.3} parent=0 // pred_fallthru
    _
  // Predicated region
  $region14: #{mat_gru_cell_forward.3} parent=0 // pred_check
    _
  $region15: #{mat_gru_cell_forward.3} parent=0 // pred_check_branch
    %17 = sbr.rel (0) target = $region17
  $region16: #{mat_gru_cell_forward.3} parent=0 // pred_region
    _
  $region17: #{mat_gru_cell_forward.3} parent=0 // pred_fallthru
    _
  %v18 = vld [vmem:[%s0] sm:$0xff]
  %v19 = vld [vmem:[%s0 + $0x8] sm:$0xff]
  %v20 = vld [vmem:[%s1] sm:$0xff]
  %v21 = vld [vmem:[%s1 + $0x8] sm:$0xff]
  %v22 = vld [vmem:[%s1 + $0x10] sm:$0xff]
  %v23 = vld [vmem:[%s1 + $0x18] sm:$0xff]
  %vm24 = vcmask 261120
  %v26 = vsel %vm24, %v18, 0
  %v29 = vsel %vm24, %v19, 0
  %31 = vmatprep.subr.mxu0 0.0
  %32 = vmatpush1.msra.mxu0 0.0
  %33 = vmatprep.subr.mxu0 0.0
  %34 = vmatpush1.msra.mxu0 0.0
  %35 = vmatprep.subr.mxu0 0.0
  %36 = vmatpush1.msra.mxu0 0.0
  %37 = vmatprep.subr.mxu0 0.0
  %38 = vmatpush1.msra.mxu0 0.0
  %39 = vmatprep.subr.mxu0 0.0
  %40 = vmatpush1.msra.mxu0 0.0
  %41 = vmatprep.subr.mxu0 0.0
  %42 = vmatpush1.msra.mxu0 0.0
  %43 = vmatprep.subr.mxu0 0.0
  %44 = vmatpush1.msra.mxu0 0.0
  %45 = vmatprep.subr.mxu0 0.0
  %46 = vmatpush1.msra.mxu0 0.0
  %47 = vmatprep.subr.mxu0 0.0
  %48 = vmatpush1.msra.mxu0 0.0
  %49 = vmatprep.subr.mxu0 0.0
  %50 = vmatpush1.msra.mxu0 0.0
  %51 = vmatprep.subr.mxu0 0.0
  %52 = vmatpush1.msra.mxu0 0.0
  %53 = vmatprep.subr.mxu0 0.0
  %54 = vmatpush1.msra.mxu0 0.0
  %55 = vmatprep.subr.mxu0 0.0
  %56 = vmatpush1.msra.mxu0 %v23
  %57 = vmatprep.subr.mxu0 0.0
  %58 = vmatpush1.msra.mxu0 %v22
  %59 = vmatprep.subr.mxu0 0.0
  %60 = vmatpush1.msra.mxu0 %v21
  %61 = vmatprep.subr.mxu0 0.0
  %62 = vmatpush1.msra.mxu0 %v20
  %63 = vmatprep.subr.mxu0 0.0
  %64 = vmatpush2.msra.mxu0 0.0
  %65 = vmatprep.subr.mxu0 0.0
  %66 = vmatpush2.msra.mxu0 0.0
  %67 = vmatprep.subr.mxu0 0.0
  %68 = vmatpush2.msra.mxu0 0.0
  %69 = vmatprep.subr.mxu0 0.0
  %70 = vmatpush2.msra.mxu0 0.0
  %71 = vmatprep.subr.mxu0 0.0
  %72 = vmatpush2.msra.mxu0 0.0
  %73 = vmatprep.subr.mxu0 0.0
  %74 = vmatpush2.msra.mxu0 0.0
  %75 = vmatprep.subr.mxu0 0.0
  %76 = vmatpush2.msra.mxu0 0.0
  %77 = vmatprep.subr.mxu0 0.0
  %78 = vmatpush2.msra.mxu0 0.0
  %79 = vmatprep.subr.mxu0 0.0
  %80 = vmatpush2.msra.mxu0 0.0
  %81 = vmatprep.subr.mxu0 0.0
  %82 = vmatpush2.msra.mxu0 0.0
  %83 = vmatprep.subr.mxu0 0.0
  %84 = vmatpush2.msra.mxu0 0.0
  %85 = vmatprep.subr.mxu0 0.0
  %86 = vmatpush2.msra.mxu0 0.0
  %87 = vmatprep.subr.mxu0 0.0
  %88 = vmatpush2.msra.mxu0 0.0
  %89 = vmatprep.subr.mxu0 0.0
  %90 = vmatpush2.msra.mxu0 0.0
  %91 = vmatprep.subr.mxu0 0.0
  %92 = vmatpush2.msra.mxu0 0.0
  %93 = vmatprep.subr.mxu0 0.0
  %94 = vmatpush2.msra.mxu0 0.0
  %95 = vmatprep.mubr.f32.mxu0 0.0
  %96 = vmatmul.mubr.f32.gmra.mxu0 %v26
  %v97 = vpop.f32.mrf.mxu0
  %v98 = vadd.f32 0.0, %v97
  %v99 = vpop.f32.mrf.mxu0
  %100 = vmatprep.mubr.f32.mxu0 0.0
  %101 = vmatmul.mubr.f32.gmra.mxu0 %v29
  %v102 = vpop.f32.mrf.mxu0
  %v103 = vadd.f32 0.0, %v102
  %v104 = vpop.f32.mrf.mxu0
  %105 = vdwg.mxu0
  %s106 = sld [smem:[#allocation2]]
  %v107 = vstv %s106
  %v108 = vmul.f32 %v98, %v107
  %v109 = vmul.f32 %v103, %v107
  %v110 = vld [vmem:[%s2] sm:$0xff]
  %v111 = vld [vmem:[%s2 + $0x8] sm:$0xff]
  %v112 = vadd.f32 %v108, %v110
  %v113 = vadd.f32 %v109, %v111
  %vm114 = vcmask 7168
  %115 = vst.msk [vmem:[%s4] sm:$0xff] %vm114, %v112
  %116 = vst.msk [vmem:[%s4 + $0x8] sm:$0xff] %vm114, %v113
  // Predicated region
  $region18: #{mat_gru_cell_forward.3} parent=0 // pred_check
    _
  $region19: #{mat_gru_cell_forward.3} parent=0 // pred_check_branch
    %118 = sbr.rel (0) target = $region21
  $region20: #{mat_gru_cell_forward.3} parent=0 // pred_region
    _
  $region21: #{mat_gru_cell_forward.3} parent=0 // pred_fallthru
    _
  // Predicated region
  $region22: #{mat_gru_cell_forward.3} parent=0 // pred_check
    _
  $region23: #{mat_gru_cell_forward.3} parent=0 // pred_check_branch
    %120 = sbr.rel (0) target = $region25
  $region24: #{mat_gru_cell_forward.3} parent=0 // pred_region
    _
  $region25: #{mat_gru_cell_forward.3} parent=0 // pred_fallthru
    _

// kernel: mat_gru_cell_forward.4
$region0: #{mat_gru_cell_forward.4}
  #allocation0 [shape = 'u32[]', space=smem, size = 0x4, offset = 0x4, fixed_abs, tag = 'smem constant byte address 0x4 - core index']
  #allocation1 [shape = 'u32[144,128]{1,0:T(1,128)}', space=vmem, size = 0x12000, scoped, tag = 'internal scratch']
  #allocation2 [shape = 'f32[8,32]{1,0:T(8,128)}', space=vmem, size = 0x1000, scoped, tag = 'scratch operand']
  #allocation3 [shape = 's32[8]{0}', space=sflag, size = 0x20, scoped, tag = 'scratch operand']
  #allocation4 [shape = 's32[1]{0}', space=sflag, size = 0x4, scoped, tag = 'scoped memory for mat_gru_cell_forward.4']
  #allocation5 [shape = 'u8[512]{0}', space=smem, size = 0x200, scoped, tag = 'prefetched SMEM operand 0']
  #allocation6 [shape = 's32[]', space=sflag, size = 0x4, offset = 0, fixed_abs, tag = 'sflag constant byte address 0x0 - dummy sync flag']
  #allocation7 [shape = 's32[]', space=sflag, size = 0x4, offset = 0, fixed_abs, tag = 'sflag constant byte address 0x0 - dummy sync flag']
  #allocation8 [shape = 's32[]', space=sflag, size = 0x4, offset = 0, fixed_abs, tag = 'sflag constant byte address 0x0 - dummy sync flag']
  #allocation9 [shape = 's32[]', space=sflag, size = 0x4, offset = 0, fixed_abs, tag = 'sflag constant byte address 0x0 - dummy sync flag']
  #allocation10 [shape = 's32[]', space=sflag, size = 0x4, offset = 0, fixed_abs, tag = 'sflag constant byte address 0x0 - dummy sync flag']
  #allocation11 [shape = 's32[]', space=sflag, size = 0x4, offset = 0, fixed_abs, tag = 'sflag constant byte address 0x0 - dummy sync flag']
  #allocation12 [shape = 's32[]', space=sflag, size = 0x4, offset = 0, fixed_abs, tag = 'sflag constant byte address 0x0 - dummy sync flag']
  #allocation13 [shape = 's32[]', space=sflag, size = 0x4, offset = 0, fixed_abs, tag = 'sflag constant byte address 0x0 - dummy sync flag']
  %s0 = inlined_call_operand.vmem [shape: s32[8], index: 0, kind: input, shape index: {}]
  %s1 = inlined_call_operand.vmem [shape: f32[8,1], index: 1, kind: input, shape index: {}]
  %s2 = inlined_call_operand.vmem [shape: f32[16,32], index: 2, kind: input, shape index: {}]
  %s3 = inlined_call_operand.vmem [shape: f32[8,32], index: 3, kind: output, shape index: {}]
  %s4 = sld [smem:[#allocation0]]
  $region254: #{mat_gru_cell_forward.4} parent=0
    _
  %s6 = ssub.s32 1, %s4
  %s7 = scalar_select 0, %s6, %s4
  %s8 = sshll.u32 %s0, 4
  %s9 = int_to_ptr.vmem [resolvable:$true] %s8
  %11 = dma.vmem_to_smem %s9, 16, [#allocation5], [#allocation4]
  %12 = dma.done [#allocation4], 16
  %13 = sfence
  // Predicated region
  $region2: #{mat_gru_cell_forward.4} parent=0 // pred_check
    _
  $region3: #{mat_gru_cell_forward.4} parent=0 // pred_check_branch
    %15 = sbr.rel (0) target = $region5
  $region4: #{mat_gru_cell_forward.4} parent=0 // pred_region
    _
  $region5: #{mat_gru_cell_forward.4} parent=0 // pred_fallthru
    _
  %s16 = smul.u32 0, 8
  %s17 = sld [smem:[#allocation5 + %s16]]
  %s18 = scalar_lea.vmem %s2, %s17
  %p20 = scmp.lt.u32.totalorder 1, 8
  %p21 = pneg %p20
  // Predicated region
  $region6: #{mat_gru_cell_forward.4} parent=0 // pred_check
    _
  $region7: #{mat_gru_cell_forward.4} parent=0 // pred_check_branch
    %23 = sbr.rel (%p20) target = $region9
  $region8: #{mat_gru_cell_forward.4} parent=0 // pred_region
    %s39 = sand.u32 1, 7
    %p40 = scmp.eq.s32.totalorder %s39, 0
    %p41 = pneg %p40
    // Predicated region
    $region21: #{mat_gru_cell_forward.4} parent=8 // pred_check
      _
    $region22: #{mat_gru_cell_forward.4} parent=8 // pred_check_branch
      %43 = sbr.rel (%p40) target = $region24
    $region23: #{mat_gru_cell_forward.4} parent=8 // pred_region
      %s44 = sand.u32 1, 7
      %s45 = ssub.s32 1, %s44
      %s46 = scalar_lea.vmem %s18, %s45
      %s47 = ssub.s32 1, %s44
      %s48 = scalar_lea.vmem [#allocation2], %s47
      %s49 = sshll.u32 1, %s44
      %s50 = ssub.s32 %s49, 1
      loop: start=0, step=1, limit=1
      $region25: #{mat_gru_cell_forward.4} parent=23 // loop_pre_header
        _
      $region26: #{mat_gru_cell_forward.4} parent=23 // loop_header
        %s52 = sphi 0, %s56
        %p53 = scmp.ge.s32.totalorder %s52, 1
        %s57 = sphi %s46, %s46
        %s58 = sphi %s48, %s48
      $region27: #{mat_gru_cell_forward.4} parent=23 // loop_header_branch
        %55 = sbr.rel (%p53) target = $region31
      $region28: #{mat_gru_cell_forward.4} parent=23 // loop_body
        %v59 = vld [vmem:[%s57] sm:%s50]
        %60 = vst [vmem:[%s58] sm:%s50] %v59
      $region29: #{mat_gru_cell_forward.4} parent=23 // loop_footer
        %s56 = sadd.s32 1, %s52
      $region30: #{mat_gru_cell_forward.4} parent=23 // loop_footer_branch
        %51 = sbr.rel target = $region26
      $region31: #{mat_gru_cell_forward.4} parent=23 // loop_exit
        _
    $region24: #{mat_gru_cell_forward.4} parent=8 // pred_fallthru
      _
  $region9: #{mat_gru_cell_forward.4} parent=0 // pred_fallthru
    _
  // Predicated region
  $region10: #{mat_gru_cell_forward.4} parent=0 // pred_check
    %p24 = pneg %p20
  $region11: #{mat_gru_cell_forward.4} parent=0 // pred_check_branch
    %26 = sbr.rel (%p24) target = $region13
  $region12: #{mat_gru_cell_forward.4} parent=0 // pred_region
    %s27 = sshll.u32 1, 1
    %s28 = ssub.s32 %s27, 1
    loop: start=0, step=1, limit=1
    $region14: #{mat_gru_cell_forward.4} parent=12 // loop_pre_header
      _
    $region15: #{mat_gru_cell_forward.4} parent=12 // loop_header
      %s30 = sphi 0, %s34
      %p31 = scmp.ge.s32.totalorder %s30, 1
      %s35 = sphi %s18, %s18
      %s36 = sphi [#allocation2], [#allocation2]
    $region16: #{mat_gru_cell_forward.4} parent=12 // loop_header_branch
      %33 = sbr.rel (%p31) target = $region20
    $region17: #{mat_gru_cell_forward.4} parent=12 // loop_body
      %v37 = vld [vmem:[%s35] sm:%s28]
      %38 = vst [vmem:[%s36] sm:%s28] %v37
    $region18: #{mat_gru_cell_forward.4} parent=12 // loop_footer
      %s34 = sadd.s32 1, %s30
    $region19: #{mat_gru_cell_forward.4} parent=12 // loop_footer_branch
      %29 = sbr.rel target = $region15
    $region20: #{mat_gru_cell_forward.4} parent=12 // loop_exit
      _
  $region13: #{mat_gru_cell_forward.4} parent=0 // pred_fallthru
    _
  // Predicated region
  $region32: #{mat_gru_cell_forward.4} parent=0 // pred_check
    _
  $region33: #{mat_gru_cell_forward.4} parent=0 // pred_check_branch
    %63 = sbr.rel (0) target = $region35
  $region34: #{mat_gru_cell_forward.4} parent=0 // pred_region
    %64 = vsyncadd [#allocation3], 16
  $region35: #{mat_gru_cell_forward.4} parent=0 // pred_fallthru
    _
  %s65 = sadd.s32 %s16, 1
  %s66 = sld [smem:[#allocation5 + %s65]]
  %s67 = scalar_lea.vmem %s2, %s66
  %s68 = scalar_lea.vmem [#allocation2], 1
  %s69 = scalar_lea.sflag [#allocation3], 1
  %p71 = scmp.lt.u32.totalorder 1, 8
  %p72 = pneg %p71
  // Predicated region
  $region36: #{mat_gru_cell_forward.4} parent=0 // pred_check
    _
  $region37: #{mat_gru_cell_forward.4} parent=0 // pred_check_branch
    %74 = sbr.rel (%p71) target = $region39
  $region38: #{mat_gru_cell_forward.4} parent=0 // pred_region
    %s90 = sand.u32 1, 7
    %p91 = scmp.eq.s32.totalorder %s90, 0
    %p92 = pneg %p91
    // Predicated region
    $region51: #{mat_gru_cell_forward.4} parent=38 // pred_check
      _
    $region52: #{mat_gru_cell_forward.4} parent=38 // pred_check_branch
      %94 = sbr.rel (%p91) target = $region54
    $region53: #{mat_gru_cell_forward.4} parent=38 // pred_region
      %s95 = sand.u32 1, 7
      %s96 = ssub.s32 1, %s95
      %s97 = scalar_lea.vmem %s67, %s96
      %s98 = ssub.s32 1, %s95
      %s99 = scalar_lea.vmem %s68, %s98 [#allocation2]
      %s100 = sshll.u32 1, %s95
      %s101 = ssub.s32 %s100, 1
      loop: start=0, step=1, limit=1
      $region55: #{mat_gru_cell_forward.4} parent=53 // loop_pre_header
        _
      $region56: #{mat_gru_cell_forward.4} parent=53 // loop_header
        %s103 = sphi 0, %s107
        %p104 = scmp.ge.s32.totalorder %s103, 1
        %s108 = sphi %s97, %s97
        %s109 = sphi %s99, %s99
      $region57: #{mat_gru_cell_forward.4} parent=53 // loop_header_branch
        %106 = sbr.rel (%p104) target = $region61
      $region58: #{mat_gru_cell_forward.4} parent=53 // loop_body
        %v110 = vld [vmem:[%s108] sm:%s101]
        %111 = vst [vmem:[%s109] sm:%s101] %v110
      $region59: #{mat_gru_cell_forward.4} parent=53 // loop_footer
        %s107 = sadd.s32 1, %s103
      $region60: #{mat_gru_cell_forward.4} parent=53 // loop_footer_branch
        %102 = sbr.rel target = $region56
      $region61: #{mat_gru_cell_forward.4} parent=53 // loop_exit
        _
    $region54: #{mat_gru_cell_forward.4} parent=38 // pred_fallthru
      _
  $region39: #{mat_gru_cell_forward.4} parent=0 // pred_fallthru
    _
  // Predicated region
  $region40: #{mat_gru_cell_forward.4} parent=0 // pred_check
    %p75 = pneg %p71
  $region41: #{mat_gru_cell_forward.4} parent=0 // pred_check_branch
    %77 = sbr.rel (%p75) target = $region43
  $region42: #{mat_gru_cell_forward.4} parent=0 // pred_region
    %s78 = sshll.u32 1, 1
    %s79 = ssub.s32 %s78, 1
    loop: start=0, step=1, limit=1
    $region44: #{mat_gru_cell_forward.4} parent=42 // loop_pre_header
      _
    $region45: #{mat_gru_cell_forward.4} parent=42 // loop_header
      %s81 = sphi 0, %s85
      %p82 = scmp.ge.s32.totalorder %s81, 1
      %s86 = sphi %s67, %s67
      %s87 = sphi %s68, %s68
    $region46: #{mat_gru_cell_forward.4} parent=42 // loop_header_branch
      %84 = sbr.rel (%p82) target = $region50
    $region47: #{mat_gru_cell_forward.4} parent=42 // loop_body
      %v88 = vld [vmem:[%s86] sm:%s79]
      %89 = vst [vmem:[%s87] sm:%s79] %v88
    $region48: #{mat_gru_cell_forward.4} parent=42 // loop_footer
      %s85 = sadd.s32 1, %s81
    $region49: #{mat_gru_cell_forward.4} parent=42 // loop_footer_branch
      %80 = sbr.rel target = $region45
    $region50: #{mat_gru_cell_forward.4} parent=42 // loop_exit
      _
  $region43: #{mat_gru_cell_forward.4} parent=0 // pred_fallthru
    _
  // Predicated region
  $region62: #{mat_gru_cell_forward.4} parent=0 // pred_check
    _
  $region63: #{mat_gru_cell_forward.4} parent=0 // pred_check_branch
    %114 = sbr.rel (0) target = $region65
  $region64: #{mat_gru_cell_forward.4} parent=0 // pred_region
    %115 = vsyncadd %s69, 16
  $region65: #{mat_gru_cell_forward.4} parent=0 // pred_fallthru
    _
  %s116 = sadd.s32 %s16, 2
  %s117 = sld [smem:[#allocation5 + %s116]]
  %s118 = scalar_lea.vmem %s2, %s117
  %s119 = scalar_lea.vmem [#allocation2], 2
  %s120 = scalar_lea.sflag [#allocation3], 2
  %p122 = scmp.lt.u32.totalorder 1, 8
  %p123 = pneg %p122
  // Predicated region
  $region66: #{mat_gru_cell_forward.4} parent=0 // pred_check
    _
  $region67: #{mat_gru_cell_forward.4} parent=0 // pred_check_branch
    %125 = sbr.rel (%p122) target = $region69
  $region68: #{mat_gru_cell_forward.4} parent=0 // pred_region
    %s141 = sand.u32 1, 7
    %p142 = scmp.eq.s32.totalorder %s141, 0
    %p143 = pneg %p142
    // Predicated region
    $region81: #{mat_gru_cell_forward.4} parent=68 // pred_check
      _
    $region82: #{mat_gru_cell_forward.4} parent=68 // pred_check_branch
      %145 = sbr.rel (%p142) target = $region84
    $region83: #{mat_gru_cell_forward.4} parent=68 // pred_region
      %s146 = sand.u32 1, 7
      %s147 = ssub.s32 1, %s146
      %s148 = scalar_lea.vmem %s118, %s147
      %s149 = ssub.s32 1, %s146
      %s150 = scalar_lea.vmem %s119, %s149 [#allocation2]
      %s151 = sshll.u32 1, %s146
      %s152 = ssub.s32 %s151, 1
      loop: start=0, step=1, limit=1
      $region85: #{mat_gru_cell_forward.4} parent=83 // loop_pre_header
        _
      $region86: #{mat_gru_cell_forward.4} parent=83 // loop_header
        %s154 = sphi 0, %s158
        %p155 = scmp.ge.s32.totalorder %s154, 1
        %s159 = sphi %s148, %s148
        %s160 = sphi %s150, %s150
      $region87: #{mat_gru_cell_forward.4} parent=83 // loop_header_branch
        %157 = sbr.rel (%p155) target = $region91
      $region88: #{mat_gru_cell_forward.4} parent=83 // loop_body
        %v161 = vld [vmem:[%s159] sm:%s152]
        %162 = vst [vmem:[%s160] sm:%s152] %v161
      $region89: #{mat_gru_cell_forward.4} parent=83 // loop_footer
        %s158 = sadd.s32 1, %s154
      $region90: #{mat_gru_cell_forward.4} parent=83 // loop_footer_branch
        %153 = sbr.rel target = $region86
      $region91: #{mat_gru_cell_forward.4} parent=83 // loop_exit
        _
    $region84: #{mat_gru_cell_forward.4} parent=68 // pred_fallthru
      _
  $region69: #{mat_gru_cell_forward.4} parent=0 // pred_fallthru
    _
  // Predicated region
  $region70: #{mat_gru_cell_forward.4} parent=0 // pred_check
    %p126 = pneg %p122
  $region71: #{mat_gru_cell_forward.4} parent=0 // pred_check_branch
    %128 = sbr.rel (%p126) target = $region73
  $region72: #{mat_gru_cell_forward.4} parent=0 // pred_region
    %s129 = sshll.u32 1, 1
    %s130 = ssub.s32 %s129, 1
    loop: start=0, step=1, limit=1
    $region74: #{mat_gru_cell_forward.4} parent=72 // loop_pre_header
      _
    $region75: #{mat_gru_cell_forward.4} parent=72 // loop_header
      %s132 = sphi 0, %s136
      %p133 = scmp.ge.s32.totalorder %s132, 1
      %s137 = sphi %s118, %s118
      %s138 = sphi %s119, %s119
    $region76: #{mat_gru_cell_forward.4} parent=72 // loop_header_branch
      %135 = sbr.rel (%p133) target = $region80
    $region77: #{mat_gru_cell_forward.4} parent=72 // loop_body
      %v139 = vld [vmem:[%s137] sm:%s130]
      %140 = vst [vmem:[%s138] sm:%s130] %v139
    $region78: #{mat_gru_cell_forward.4} parent=72 // loop_footer
      %s136 = sadd.s32 1, %s132
    $region79: #{mat_gru_cell_forward.4} parent=72 // loop_footer_branch
      %131 = sbr.rel target = $region75
    $region80: #{mat_gru_cell_forward.4} parent=72 // loop_exit
      _
  $region73: #{mat_gru_cell_forward.4} parent=0 // pred_fallthru
    _
  // Predicated region
  $region92: #{mat_gru_cell_forward.4} parent=0 // pred_check
    _
  $region93: #{mat_gru_cell_forward.4} parent=0 // pred_check_branch
    %165 = sbr.rel (0) target = $region95
  $region94: #{mat_gru_cell_forward.4} parent=0 // pred_region
    %166 = vsyncadd %s120, 16
  $region95: #{mat_gru_cell_forward.4} parent=0 // pred_fallthru
    _
  %s167 = sadd.s32 %s16, 3
  %s168 = sld [smem:[#allocation5 + %s167]]
  %s169 = scalar_lea.vmem %s2, %s168
  %s170 = scalar_lea.vmem [#allocation2], 3
  %s171 = scalar_lea.sflag [#allocation3], 3
  %p173 = scmp.lt.u32.totalorder 1, 8
  %p174 = pneg %p173
  // Predicated region
  $region96: #{mat_gru_cell_forward.4} parent=0 // pred_check
    _
  $region97: #{mat_gru_cell_forward.4} parent=0 // pred_check_branch
    %176 = sbr.rel (%p173) target = $region99
  $region98: #{mat_gru_cell_forward.4} parent=0 // pred_region
    %s192 = sand.u32 1, 7
    %p193 = scmp.eq.s32.totalorder %s192, 0
    %p194 = pneg %p193
    // Predicated region
    $region111: #{mat_gru_cell_forward.4} parent=98 // pred_check
      _
    $region112: #{mat_gru_cell_forward.4} parent=98 // pred_check_branch
      %196 = sbr.rel (%p193) target = $region114
    $region113: #{mat_gru_cell_forward.4} parent=98 // pred_region
      %s197 = sand.u32 1, 7
      %s198 = ssub.s32 1, %s197
      %s199 = scalar_lea.vmem %s169, %s198
      %s200 = ssub.s32 1, %s197
      %s201 = scalar_lea.vmem %s170, %s200 [#allocation2]
      %s202 = sshll.u32 1, %s197
      %s203 = ssub.s32 %s202, 1
      loop: start=0, step=1, limit=1
      $region115: #{mat_gru_cell_forward.4} parent=113 // loop_pre_header
        _
      $region116: #{mat_gru_cell_forward.4} parent=113 // loop_header
        %s205 = sphi 0, %s209
        %p206 = scmp.ge.s32.totalorder %s205, 1
        %s210 = sphi %s199, %s199
        %s211 = sphi %s201, %s201
      $region117: #{mat_gru_cell_forward.4} parent=113 // loop_header_branch
        %208 = sbr.rel (%p206) target = $region121
      $region118: #{mat_gru_cell_forward.4} parent=113 // loop_body
        %v212 = vld [vmem:[%s210] sm:%s203]
        %213 = vst [vmem:[%s211] sm:%s203] %v212
      $region119: #{mat_gru_cell_forward.4} parent=113 // loop_footer
        %s209 = sadd.s32 1, %s205
      $region120: #{mat_gru_cell_forward.4} parent=113 // loop_footer_branch
        %204 = sbr.rel target = $region116
      $region121: #{mat_gru_cell_forward.4} parent=113 // loop_exit
        _
    $region114: #{mat_gru_cell_forward.4} parent=98 // pred_fallthru
      _
  $region99: #{mat_gru_cell_forward.4} parent=0 // pred_fallthru
    _
  // Predicated region
  $region100: #{mat_gru_cell_forward.4} parent=0 // pred_check
    %p177 = pneg %p173
  $region101: #{mat_gru_cell_forward.4} parent=0 // pred_check_branch
    %179 = sbr.rel (%p177) target = $region103
  $region102: #{mat_gru_cell_forward.4} parent=0 // pred_region
    %s180 = sshll.u32 1, 1
    %s181 = ssub.s32 %s180, 1
    loop: start=0, step=1, limit=1
    $region104: #{mat_gru_cell_forward.4} parent=102 // loop_pre_header
      _
    $region105: #{mat_gru_cell_forward.4} parent=102 // loop_header
      %s183 = sphi 0, %s187
      %p184 = scmp.ge.s32.totalorder %s183, 1
      %s188 = sphi %s169, %s169
      %s189 = sphi %s170, %s170
    $region106: #{mat_gru_cell_forward.4} parent=102 // loop_header_branch
      %186 = sbr.rel (%p184) target = $region110
    $region107: #{mat_gru_cell_forward.4} parent=102 // loop_body
      %v190 = vld [vmem:[%s188] sm:%s181]
      %191 = vst [vmem:[%s189] sm:%s181] %v190
    $region108: #{mat_gru_cell_forward.4} parent=102 // loop_footer
      %s187 = sadd.s32 1, %s183
    $region109: #{mat_gru_cell_forward.4} parent=102 // loop_footer_branch
      %182 = sbr.rel target = $region105
    $region110: #{mat_gru_cell_forward.4} parent=102 // loop_exit
      _
  $region103: #{mat_gru_cell_forward.4} parent=0 // pred_fallthru
    _
  // Predicated region
  $region122: #{mat_gru_cell_forward.4} parent=0 // pred_check
    _
  $region123: #{mat_gru_cell_forward.4} parent=0 // pred_check_branch
    %216 = sbr.rel (0) target = $region125
  $region124: #{mat_gru_cell_forward.4} parent=0 // pred_region
    %217 = vsyncadd %s171, 16
  $region125: #{mat_gru_cell_forward.4} parent=0 // pred_fallthru
    _
  %s218 = sadd.s32 %s16, 4
  %s219 = sld [smem:[#allocation5 + %s218]]
  %s220 = scalar_lea.vmem %s2, %s219
  %s221 = scalar_lea.vmem [#allocation2], 4
  %s222 = scalar_lea.sflag [#allocation3], 4
  %p224 = scmp.lt.u32.totalorder 1, 8
  %p225 = pneg %p224
  // Predicated region
  $region126: #{mat_gru_cell_forward.4} parent=0 // pred_check
    _
  $region127: #{mat_gru_cell_forward.4} parent=0 // pred_check_branch
    %227 = sbr.rel (%p224) target = $region129
  $region128: #{mat_gru_cell_forward.4} parent=0 // pred_region
    %s243 = sand.u32 1, 7
    %p244 = scmp.eq.s32.totalorder %s243, 0
    %p245 = pneg %p244
    // Predicated region
    $region141: #{mat_gru_cell_forward.4} parent=128 // pred_check
      _
    $region142: #{mat_gru_cell_forward.4} parent=128 // pred_check_branch
      %247 = sbr.rel (%p244) target = $region144
    $region143: #{mat_gru_cell_forward.4} parent=128 // pred_region
      %s248 = sand.u32 1, 7
      %s249 = ssub.s32 1, %s248
      %s250 = scalar_lea.vmem %s220, %s249
      %s251 = ssub.s32 1, %s248
      %s252 = scalar_lea.vmem %s221, %s251 [#allocation2]
      %s253 = sshll.u32 1, %s248
      %s254 = ssub.s32 %s253, 1
      loop: start=0, step=1, limit=1
      $region145: #{mat_gru_cell_forward.4} parent=143 // loop_pre_header
        _
      $region146: #{mat_gru_cell_forward.4} parent=143 // loop_header
        %s256 = sphi 0, %s260
        %p257 = scmp.ge.s32.totalorder %s256, 1
        %s261 = sphi %s250, %s250
        %s262 = sphi %s252, %s252
      $region147: #{mat_gru_cell_forward.4} parent=143 // loop_header_branch
        %259 = sbr.rel (%p257) target = $region151
      $region148: #{mat_gru_cell_forward.4} parent=143 // loop_body
        %v263 = vld [vmem:[%s261] sm:%s254]
        %264 = vst [vmem:[%s262] sm:%s254] %v263
      $region149: #{mat_gru_cell_forward.4} parent=143 // loop_footer
        %s260 = sadd.s32 1, %s256
      $region150: #{mat_gru_cell_forward.4} parent=143 // loop_footer_branch
        %255 = sbr.rel target = $region146
      $region151: #{mat_gru_cell_forward.4} parent=143 // loop_exit
        _
    $region144: #{mat_gru_cell_forward.4} parent=128 // pred_fallthru
      _
  $region129: #{mat_gru_cell_forward.4} parent=0 // pred_fallthru
    _
  // Predicated region
  $region130: #{mat_gru_cell_forward.4} parent=0 // pred_check
    %p228 = pneg %p224
  $region131: #{mat_gru_cell_forward.4} parent=0 // pred_check_branch
    %230 = sbr.rel (%p228) target = $region133
  $region132: #{mat_gru_cell_forward.4} parent=0 // pred_region
    %s231 = sshll.u32 1, 1
    %s232 = ssub.s32 %s231, 1
    loop: start=0, step=1, limit=1
    $region134: #{mat_gru_cell_forward.4} parent=132 // loop_pre_header
      _
    $region135: #{mat_gru_cell_forward.4} parent=132 // loop_header
      %s234 = sphi 0, %s238
      %p235 = scmp.ge.s32.totalorder %s234, 1
      %s239 = sphi %s220, %s220
      %s240 = sphi %s221, %s221
    $region136: #{mat_gru_cell_forward.4} parent=132 // loop_header_branch
      %237 = sbr.rel (%p235) target = $region140
    $region137: #{mat_gru_cell_forward.4} parent=132 // loop_body
      %v241 = vld [vmem:[%s239] sm:%s232]
      %242 = vst [vmem:[%s240] sm:%s232] %v241
    $region138: #{mat_gru_cell_forward.4} parent=132 // loop_footer
      %s238 = sadd.s32 1, %s234
    $region139: #{mat_gru_cell_forward.4} parent=132 // loop_footer_branch
      %233 = sbr.rel target = $region135
    $region140: #{mat_gru_cell_forward.4} parent=132 // loop_exit
      _
  $region133: #{mat_gru_cell_forward.4} parent=0 // pred_fallthru
    _
  // Predicated region
  $region152: #{mat_gru_cell_forward.4} parent=0 // pred_check
    _
  $region153: #{mat_gru_cell_forward.4} parent=0 // pred_check_branch
    %267 = sbr.rel (0) target = $region155
  $region154: #{mat_gru_cell_forward.4} parent=0 // pred_region
    %268 = vsyncadd %s222, 16
  $region155: #{mat_gru_cell_forward.4} parent=0 // pred_fallthru
    _
  %s269 = sadd.s32 %s16, 5
  %s270 = sld [smem:[#allocation5 + %s269]]
  %s271 = scalar_lea.vmem %s2, %s270
  %s272 = scalar_lea.vmem [#allocation2], 5
  %s273 = scalar_lea.sflag [#allocation3], 5
  %p275 = scmp.lt.u32.totalorder 1, 8
  %p276 = pneg %p275
  // Predicated region
  $region156: #{mat_gru_cell_forward.4} parent=0 // pred_check
    _
  $region157: #{mat_gru_cell_forward.4} parent=0 // pred_check_branch
    %278 = sbr.rel (%p275) target = $region159
  $region158: #{mat_gru_cell_forward.4} parent=0 // pred_region
    %s294 = sand.u32 1, 7
    %p295 = scmp.eq.s32.totalorder %s294, 0
    %p296 = pneg %p295
    // Predicated region
    $region171: #{mat_gru_cell_forward.4} parent=158 // pred_check
      _
    $region172: #{mat_gru_cell_forward.4} parent=158 // pred_check_branch
      %298 = sbr.rel (%p295) target = $region174
    $region173: #{mat_gru_cell_forward.4} parent=158 // pred_region
      %s299 = sand.u32 1, 7
      %s300 = ssub.s32 1, %s299
      %s301 = scalar_lea.vmem %s271, %s300
      %s302 = ssub.s32 1, %s299
      %s303 = scalar_lea.vmem %s272, %s302 [#allocation2]
      %s304 = sshll.u32 1, %s299
      %s305 = ssub.s32 %s304, 1
      loop: start=0, step=1, limit=1
      $region175: #{mat_gru_cell_forward.4} parent=173 // loop_pre_header
        _
      $region176: #{mat_gru_cell_forward.4} parent=173 // loop_header
        %s307 = sphi 0, %s311
        %p308 = scmp.ge.s32.totalorder %s307, 1
        %s312 = sphi %s301, %s301
        %s313 = sphi %s303, %s303
      $region177: #{mat_gru_cell_forward.4} parent=173 // loop_header_branch
        %310 = sbr.rel (%p308) target = $region181
      $region178: #{mat_gru_cell_forward.4} parent=173 // loop_body
        %v314 = vld [vmem:[%s312] sm:%s305]
        %315 = vst [vmem:[%s313] sm:%s305] %v314
      $region179: #{mat_gru_cell_forward.4} parent=173 // loop_footer
        %s311 = sadd.s32 1, %s307
      $region180: #{mat_gru_cell_forward.4} parent=173 // loop_footer_branch
        %306 = sbr.rel target = $region176
      $region181: #{mat_gru_cell_forward.4} parent=173 // loop_exit
        _
    $region174: #{mat_gru_cell_forward.4} parent=158 // pred_fallthru
      _
  $region159: #{mat_gru_cell_forward.4} parent=0 // pred_fallthru
    _
  // Predicated region
  $region160: #{mat_gru_cell_forward.4} parent=0 // pred_check
    %p279 = pneg %p275
  $region161: #{mat_gru_cell_forward.4} parent=0 // pred_check_branch
    %281 = sbr.rel (%p279) target = $region163
  $region162: #{mat_gru_cell_forward.4} parent=0 // pred_region
    %s282 = sshll.u32 1, 1
    %s283 = ssub.s32 %s282, 1
    loop: start=0, step=1, limit=1
    $region164: #{mat_gru_cell_forward.4} parent=162 // loop_pre_header
      _
    $region165: #{mat_gru_cell_forward.4} parent=162 // loop_header
      %s285 = sphi 0, %s289
      %p286 = scmp.ge.s32.totalorder %s285, 1
      %s290 = sphi %s271, %s271
      %s291 = sphi %s272, %s272
    $region166: #{mat_gru_cell_forward.4} parent=162 // loop_header_branch
      %288 = sbr.rel (%p286) target = $region170
    $region167: #{mat_gru_cell_forward.4} parent=162 // loop_body
      %v292 = vld [vmem:[%s290] sm:%s283]
      %293 = vst [vmem:[%s291] sm:%s283] %v292
    $region168: #{mat_gru_cell_forward.4} parent=162 // loop_footer
      %s289 = sadd.s32 1, %s285
    $region169: #{mat_gru_cell_forward.4} parent=162 // loop_footer_branch
      %284 = sbr.rel target = $region165
    $region170: #{mat_gru_cell_forward.4} parent=162 // loop_exit
      _
  $region163: #{mat_gru_cell_forward.4} parent=0 // pred_fallthru
    _
  // Predicated region
  $region182: #{mat_gru_cell_forward.4} parent=0 // pred_check
    _
  $region183: #{mat_gru_cell_forward.4} parent=0 // pred_check_branch
    %318 = sbr.rel (0) target = $region185
  $region184: #{mat_gru_cell_forward.4} parent=0 // pred_region
    %319 = vsyncadd %s273, 16
  $region185: #{mat_gru_cell_forward.4} parent=0 // pred_fallthru
    _
  %s320 = sadd.s32 %s16, 6
  %s321 = sld [smem:[#allocation5 + %s320]]
  %s322 = scalar_lea.vmem %s2, %s321
  %s323 = scalar_lea.vmem [#allocation2], 6
  %s324 = scalar_lea.sflag [#allocation3], 6
  %p326 = scmp.lt.u32.totalorder 1, 8
  %p327 = pneg %p326
  // Predicated region
  $region186: #{mat_gru_cell_forward.4} parent=0 // pred_check
    _
  $region187: #{mat_gru_cell_forward.4} parent=0 // pred_check_branch
    %329 = sbr.rel (%p326) target = $region189
  $region188: #{mat_gru_cell_forward.4} parent=0 // pred_region
    %s345 = sand.u32 1, 7
    %p346 = scmp.eq.s32.totalorder %s345, 0
    %p347 = pneg %p346
    // Predicated region
    $region201: #{mat_gru_cell_forward.4} parent=188 // pred_check
      _
    $region202: #{mat_gru_cell_forward.4} parent=188 // pred_check_branch
      %349 = sbr.rel (%p346) target = $region204
    $region203: #{mat_gru_cell_forward.4} parent=188 // pred_region
      %s350 = sand.u32 1, 7
      %s351 = ssub.s32 1, %s350
      %s352 = scalar_lea.vmem %s322, %s351
      %s353 = ssub.s32 1, %s350
      %s354 = scalar_lea.vmem %s323, %s353 [#allocation2]
      %s355 = sshll.u32 1, %s350
      %s356 = ssub.s32 %s355, 1
      loop: start=0, step=1, limit=1
      $region205: #{mat_gru_cell_forward.4} parent=203 // loop_pre_header
        _
      $region206: #{mat_gru_cell_forward.4} parent=203 // loop_header
        %s358 = sphi 0, %s362
        %p359 = scmp.ge.s32.totalorder %s358, 1
        %s363 = sphi %s352, %s352
        %s364 = sphi %s354, %s354
      $region207: #{mat_gru_cell_forward.4} parent=203 // loop_header_branch
        %361 = sbr.rel (%p359) target = $region211
      $region208: #{mat_gru_cell_forward.4} parent=203 // loop_body
        %v365 = vld [vmem:[%s363] sm:%s356]
        %366 = vst [vmem:[%s364] sm:%s356] %v365
      $region209: #{mat_gru_cell_forward.4} parent=203 // loop_footer
        %s362 = sadd.s32 1, %s358
      $region210: #{mat_gru_cell_forward.4} parent=203 // loop_footer_branch
        %357 = sbr.rel target = $region206
      $region211: #{mat_gru_cell_forward.4} parent=203 // loop_exit
        _
    $region204: #{mat_gru_cell_forward.4} parent=188 // pred_fallthru
      _
  $region189: #{mat_gru_cell_forward.4} parent=0 // pred_fallthru
    _
  // Predicated region
  $region190: #{mat_gru_cell_forward.4} parent=0 // pred_check
    %p330 = pneg %p326
  $region191: #{mat_gru_cell_forward.4} parent=0 // pred_check_branch
    %332 = sbr.rel (%p330) target = $region193
  $region192: #{mat_gru_cell_forward.4} parent=0 // pred_region
    %s333 = sshll.u32 1, 1
    %s334 = ssub.s32 %s333, 1
    loop: start=0, step=1, limit=1
    $region194: #{mat_gru_cell_forward.4} parent=192 // loop_pre_header
      _
    $region195: #{mat_gru_cell_forward.4} parent=192 // loop_header
      %s336 = sphi 0, %s340
      %p337 = scmp.ge.s32.totalorder %s336, 1
      %s341 = sphi %s322, %s322
      %s342 = sphi %s323, %s323
    $region196: #{mat_gru_cell_forward.4} parent=192 // loop_header_branch
      %339 = sbr.rel (%p337) target = $region200
    $region197: #{mat_gru_cell_forward.4} parent=192 // loop_body
      %v343 = vld [vmem:[%s341] sm:%s334]
      %344 = vst [vmem:[%s342] sm:%s334] %v343
    $region198: #{mat_gru_cell_forward.4} parent=192 // loop_footer
      %s340 = sadd.s32 1, %s336
    $region199: #{mat_gru_cell_forward.4} parent=192 // loop_footer_branch
      %335 = sbr.rel target = $region195
    $region200: #{mat_gru_cell_forward.4} parent=192 // loop_exit
      _
  $region193: #{mat_gru_cell_forward.4} parent=0 // pred_fallthru
    _
  // Predicated region
  $region212: #{mat_gru_cell_forward.4} parent=0 // pred_check
    _
  $region213: #{mat_gru_cell_forward.4} parent=0 // pred_check_branch
    %369 = sbr.rel (0) target = $region215
  $region214: #{mat_gru_cell_forward.4} parent=0 // pred_region
    %370 = vsyncadd %s324, 16
  $region215: #{mat_gru_cell_forward.4} parent=0 // pred_fallthru
    _
  %s371 = sadd.s32 %s16, 7
  %s372 = sld [smem:[#allocation5 + %s371]]
  %s373 = scalar_lea.vmem %s2, %s372
  %s374 = scalar_lea.vmem [#allocation2], 7
  %s375 = scalar_lea.sflag [#allocation3], 7
  %p377 = scmp.lt.u32.totalorder 1, 8
  %p378 = pneg %p377
  // Predicated region
  $region216: #{mat_gru_cell_forward.4} parent=0 // pred_check
    _
  $region217: #{mat_gru_cell_forward.4} parent=0 // pred_check_branch
    %380 = sbr.rel (%p377) target = $region219
  $region218: #{mat_gru_cell_forward.4} parent=0 // pred_region
    %s396 = sand.u32 1, 7
    %p397 = scmp.eq.s32.totalorder %s396, 0
    %p398 = pneg %p397
    // Predicated region
    $region231: #{mat_gru_cell_forward.4} parent=218 // pred_check
      _
    $region232: #{mat_gru_cell_forward.4} parent=218 // pred_check_branch
      %400 = sbr.rel (%p397) target = $region234
    $region233: #{mat_gru_cell_forward.4} parent=218 // pred_region
      %s401 = sand.u32 1, 7
      %s402 = ssub.s32 1, %s401
      %s403 = scalar_lea.vmem %s373, %s402
      %s404 = ssub.s32 1, %s401
      %s405 = scalar_lea.vmem %s374, %s404 [#allocation2]
      %s406 = sshll.u32 1, %s401
      %s407 = ssub.s32 %s406, 1
      loop: start=0, step=1, limit=1
      $region235: #{mat_gru_cell_forward.4} parent=233 // loop_pre_header
        _
      $region236: #{mat_gru_cell_forward.4} parent=233 // loop_header
        %s409 = sphi 0, %s413
        %p410 = scmp.ge.s32.totalorder %s409, 1
        %s414 = sphi %s403, %s403
        %s415 = sphi %s405, %s405
      $region237: #{mat_gru_cell_forward.4} parent=233 // loop_header_branch
        %412 = sbr.rel (%p410) target = $region241
      $region238: #{mat_gru_cell_forward.4} parent=233 // loop_body
        %v416 = vld [vmem:[%s414] sm:%s407]
        %417 = vst [vmem:[%s415] sm:%s407] %v416
      $region239: #{mat_gru_cell_forward.4} parent=233 // loop_footer
        %s413 = sadd.s32 1, %s409
      $region240: #{mat_gru_cell_forward.4} parent=233 // loop_footer_branch
        %408 = sbr.rel target = $region236
      $region241: #{mat_gru_cell_forward.4} parent=233 // loop_exit
        _
    $region234: #{mat_gru_cell_forward.4} parent=218 // pred_fallthru
      _
  $region219: #{mat_gru_cell_forward.4} parent=0 // pred_fallthru
    _
  // Predicated region
  $region220: #{mat_gru_cell_forward.4} parent=0 // pred_check
    %p381 = pneg %p377
  $region221: #{mat_gru_cell_forward.4} parent=0 // pred_check_branch
    %383 = sbr.rel (%p381) target = $region223
  $region222: #{mat_gru_cell_forward.4} parent=0 // pred_region
    %s384 = sshll.u32 1, 1
    %s385 = ssub.s32 %s384, 1
    loop: start=0, step=1, limit=1
    $region224: #{mat_gru_cell_forward.4} parent=222 // loop_pre_header
      _
    $region225: #{mat_gru_cell_forward.4} parent=222 // loop_header
      %s387 = sphi 0, %s391
      %p388 = scmp.ge.s32.totalorder %s387, 1
      %s392 = sphi %s373, %s373
      %s393 = sphi %s374, %s374
    $region226: #{mat_gru_cell_forward.4} parent=222 // loop_header_branch
      %390 = sbr.rel (%p388) target = $region230
    $region227: #{mat_gru_cell_forward.4} parent=222 // loop_body
      %v394 = vld [vmem:[%s392] sm:%s385]
      %395 = vst [vmem:[%s393] sm:%s385] %v394
    $region228: #{mat_gru_cell_forward.4} parent=222 // loop_footer
      %s391 = sadd.s32 1, %s387
    $region229: #{mat_gru_cell_forward.4} parent=222 // loop_footer_branch
      %386 = sbr.rel target = $region225
    $region230: #{mat_gru_cell_forward.4} parent=222 // loop_exit
      _
  $region223: #{mat_gru_cell_forward.4} parent=0 // pred_fallthru
    _
  // Predicated region
  $region242: #{mat_gru_cell_forward.4} parent=0 // pred_check
    _
  $region243: #{mat_gru_cell_forward.4} parent=0 // pred_check_branch
    %420 = sbr.rel (0) target = $region245
  $region244: #{mat_gru_cell_forward.4} parent=0 // pred_region
    %421 = vsyncadd %s375, 16
  $region245: #{mat_gru_cell_forward.4} parent=0 // pred_fallthru
    _
  %s422 = smul.u32 1, 1
  %s423 = sshll.u32 %s422, 4
  %424 = dma.done [#allocation3], %s423
  %s425 = sshll.u32 %s422, 4
  %426 = dma.done %s69, %s425
  %s427 = sshll.u32 %s422, 4
  %428 = dma.done %s120, %s427
  %s429 = sshll.u32 %s422, 4
  %430 = dma.done %s171, %s429
  %s431 = sshll.u32 %s422, 4
  %432 = dma.done %s222, %s431
  %s433 = sshll.u32 %s422, 4
  %434 = dma.done %s273, %s433
  %s435 = sshll.u32 %s422, 4
  %436 = dma.done %s324, %s435
  %s437 = sshll.u32 %s422, 4
  %438 = dma.done %s375, %s437
  %v439 = vld [vmem:[#allocation2] sm:$0xff]
  %v440 = vld [vmem:[%s1] sm:$0xff]
  %442 = vset.pattern.permute.xlu0 0
  %443 = vperm.xlu0 %442, %v440
  %v444 = vpop.permute.xlu0 %443
  %v446 = vmul.f32 %v439, %v444
  %vm447 = vcmask 261120
  %448 = vst.msk [vmem:[%s3] sm:$0xff] %vm447, %v446
  // Predicated region
  $region246: #{mat_gru_cell_forward.4} parent=0 // pred_check
    _
  $region247: #{mat_gru_cell_forward.4} parent=0 // pred_check_branch
    %450 = sbr.rel (0) target = $region249
  $region248: #{mat_gru_cell_forward.4} parent=0 // pred_region
    _
  $region249: #{mat_gru_cell_forward.4} parent=0 // pred_fallthru
    _
  // Predicated region
  $region250: #{mat_gru_cell_forward.4} parent=0 // pred_check
    _
  $region251: #{mat_gru_cell_forward.4} parent=0 // pred_check_branch
    %452 = sbr.rel (0) target = $region253
  $region252: #{mat_gru_cell_forward.4} parent=0 // pred_region
    _
  $region253: #{mat_gru_cell_forward.4} parent=0 // pred_fallthru
    _
  %453 = vsyncmov [#allocation3]
  %s454 = vpop.sfrf %453
  %p455 = scmp.eq.s32.totalorder %s454, 0
  %p456 = pneg %p455
  %458 = shalt.err (%p456)
  %s459 = scalar_lea.sflag [#allocation3], 1
  %460 = vsyncmov %s459
  %s461 = vpop.sfrf %460
  %p462 = scmp.eq.s32.totalorder %s461, 0
  %p463 = pneg %p462
  %465 = shalt.err (%p463)
  %s466 = scalar_lea.sflag [#allocation3], 2
  %467 = vsyncmov %s466
  %s468 = vpop.sfrf %467
  %p469 = scmp.eq.s32.totalorder %s468, 0
  %p470 = pneg %p469
  %472 = shalt.err (%p470)
  %s473 = scalar_lea.sflag [#allocation3], 3
  %474 = vsyncmov %s473
  %s475 = vpop.sfrf %474
  %p476 = scmp.eq.s32.totalorder %s475, 0
  %p477 = pneg %p476
  %479 = shalt.err (%p477)
  %s480 = scalar_lea.sflag [#allocation3], 4
  %481 = vsyncmov %s480
  %s482 = vpop.sfrf %481
  %p483 = scmp.eq.s32.totalorder %s482, 0
  %p484 = pneg %p483
  %486 = shalt.err (%p484)
  %s487 = scalar_lea.sflag [#allocation3], 5
  %488 = vsyncmov %s487
  %s489 = vpop.sfrf %488
  %p490 = scmp.eq.s32.totalorder %s489, 0
  %p491 = pneg %p490
  %493 = shalt.err (%p491)
  %s494 = scalar_lea.sflag [#allocation3], 6
  %495 = vsyncmov %s494
  %s496 = vpop.sfrf %495
  %p497 = scmp.eq.s32.totalorder %s496, 0
  %p498 = pneg %p497
  %500 = shalt.err (%p498)
  %s501 = scalar_lea.sflag [#allocation3], 7
  %502 = vsyncmov %s501
  %s503 = vpop.sfrf %502
  %p504 = scmp.eq.s32.totalorder %s503, 0
  %p505 = pneg %p504
  %507 = shalt.err (%p505)

// kernel: mat_gru_cell_forward.5
$region0: #{mat_gru_cell_forward.5}
  #allocation0 [shape = 'u32[]', space=smem, size = 0x4, offset = 0x4, fixed_abs, tag = 'smem constant byte address 0x4 - core index']
  #allocation1 [shape = 'u32[144,128]{1,0:T(1,128)}', space=vmem, size = 0x12000, scoped, tag = 'internal scratch']
  %s0 = inlined_call_operand.vmem [shape: f32[32,8], index: 0, kind: input, shape index: {}]
  %s1 = inlined_call_operand.vmem [shape: f32[32,8], index: 1, kind: input, shape index: {}]
  %s2 = inlined_call_operand.vmem [shape: f32[32,32], index: 2, kind: input, shape index: {}]
  %s3 = inlined_call_operand.vmem [shape: f32[32,32], index: 3, kind: input, shape index: {}]
  %s4 = inlined_call_operand.vmem [shape: f32[32,8], index: 4, kind: input, shape index: {}]
  %s5 = inlined_call_operand.vmem [shape: f32[32,32], index: 5, kind: input, shape index: {}]
  %s6 = inlined_call_operand.vmem [shape: f32[32,32], index: 6, kind: input, shape index: {}]
  %s7 = inlined_call_operand.vmem [shape: f32[32,8], index: 7, kind: input, shape index: {}]
  %s8 = inlined_call_operand.vmem [shape: f32[32,32], index: 8, kind: input, shape index: {}]
  %s9 = inlined_call_operand.vmem [shape: f32[32,32], index: 9, kind: input, shape index: {}]
  %s10 = inlined_call_operand.vmem [shape: f32[32,8], index: 10, kind: input, shape index: {}]
  %s11 = inlined_call_operand.vmem [shape: f32[32,8], index: 11, kind: output, shape index: {}]
  %s12 = sld [smem:[#allocation0]]
  $region54: #{mat_gru_cell_forward.5} parent=0
    _
  %s14 = ssub.s32 1, %s12
  %s15 = scalar_select 0, %s14, %s12
  // Predicated region
  $region2: #{mat_gru_cell_forward.5} parent=0 // pred_check
    _
  $region3: #{mat_gru_cell_forward.5} parent=0 // pred_check_branch
    %17 = sbr.rel (0) target = $region5
  $region4: #{mat_gru_cell_forward.5} parent=0 // pred_region
    _
  $region5: #{mat_gru_cell_forward.5} parent=0 // pred_fallthru
    _
  // Predicated region
  $region6: #{mat_gru_cell_forward.5} parent=0 // pred_check
    _
  $region7: #{mat_gru_cell_forward.5} parent=0 // pred_check_branch
    %19 = sbr.rel (0) target = $region9
  $region8: #{mat_gru_cell_forward.5} parent=0 // pred_region
    _
  $region9: #{mat_gru_cell_forward.5} parent=0 // pred_fallthru
    _
  // Predicated region
  $region10: #{mat_gru_cell_forward.5} parent=0 // pred_check
    _
  $region11: #{mat_gru_cell_forward.5} parent=0 // pred_check_branch
    %21 = sbr.rel (0) target = $region13
  $region12: #{mat_gru_cell_forward.5} parent=0 // pred_region
    _
  $region13: #{mat_gru_cell_forward.5} parent=0 // pred_fallthru
    _
  // Predicated region
  $region14: #{mat_gru_cell_forward.5} parent=0 // pred_check
    _
  $region15: #{mat_gru_cell_forward.5} parent=0 // pred_check_branch
    %23 = sbr.rel (0) target = $region17
  $region16: #{mat_gru_cell_forward.5} parent=0 // pred_region
    _
  $region17: #{mat_gru_cell_forward.5} parent=0 // pred_fallthru
    _
  // Predicated region
  $region18: #{mat_gru_cell_forward.5} parent=0 // pred_check
    _
  $region19: #{mat_gru_cell_forward.5} parent=0 // pred_check_branch
    %25 = sbr.rel (0) target = $region21
  $region20: #{mat_gru_cell_forward.5} parent=0 // pred_region
    _
  $region21: #{mat_gru_cell_forward.5} parent=0 // pred_fallthru
    _
  // Predicated region
  $region22: #{mat_gru_cell_forward.5} parent=0 // pred_check
    _
  $region23: #{mat_gru_cell_forward.5} parent=0 // pred_check_branch
    %27 = sbr.rel (0) target = $region25
  $region24: #{mat_gru_cell_forward.5} parent=0 // pred_region
    _
  $region25: #{mat_gru_cell_forward.5} parent=0 // pred_fallthru
    _
  // Predicated region
  $region26: #{mat_gru_cell_forward.5} parent=0 // pred_check
    _
  $region27: #{mat_gru_cell_forward.5} parent=0 // pred_check_branch
    %29 = sbr.rel (0) target = $region29
  $region28: #{mat_gru_cell_forward.5} parent=0 // pred_region
    _
  $region29: #{mat_gru_cell_forward.5} parent=0 // pred_fallthru
    _
  // Predicated region
  $region30: #{mat_gru_cell_forward.5} parent=0 // pred_check
    _
  $region31: #{mat_gru_cell_forward.5} parent=0 // pred_check_branch
    %31 = sbr.rel (0) target = $region33
  $region32: #{mat_gru_cell_forward.5} parent=0 // pred_region
    _
  $region33: #{mat_gru_cell_forward.5} parent=0 // pred_fallthru
    _
  // Predicated region
  $region34: #{mat_gru_cell_forward.5} parent=0 // pred_check
    _
  $region35: #{mat_gru_cell_forward.5} parent=0 // pred_check_branch
    %33 = sbr.rel (0) target = $region37
  $region36: #{mat_gru_cell_forward.5} parent=0 // pred_region
    _
  $region37: #{mat_gru_cell_forward.5} parent=0 // pred_fallthru
    _
  // Predicated region
  $region38: #{mat_gru_cell_forward.5} parent=0 // pred_check
    _
  $region39: #{mat_gru_cell_forward.5} parent=0 // pred_check_branch
    %35 = sbr.rel (0) target = $region41
  $region40: #{mat_gru_cell_forward.5} parent=0 // pred_region
    _
  $region41: #{mat_gru_cell_forward.5} parent=0 // pred_fallthru
    _
  // Predicated region
  $region42: #{mat_gru_cell_forward.5} parent=0 // pred_check
    _
  $region43: #{mat_gru_cell_forward.5} parent=0 // pred_check_branch
    %37 = sbr.rel (0) target = $region45
  $region44: #{mat_gru_cell_forward.5} parent=0 // pred_region
    _
  $region45: #{mat_gru_cell_forward.5} parent=0 // pred_fallthru
    _
  %v38 = vld [vmem:[%s0] sm:$0xff]
  %v39 = vld [vmem:[%s0 + $0x8] sm:$0xff]
  %v40 = vld [vmem:[%s0 + $0x10] sm:$0xff]
  %v41 = vld [vmem:[%s0 + $0x18] sm:$0xff]
  %v42 = vld [vmem:[%s1] sm:$0xff]
  %v43 = vld [vmem:[%s1 + $0x8] sm:$0xff]
  %v44 = vld [vmem:[%s1 + $0x10] sm:$0xff]
  %v45 = vld [vmem:[%s1 + $0x18] sm:$0xff]
  %v46 = vld [vmem:[%s2] sm:$0xff]
  %v47 = vld [vmem:[%s2 + $0x8] sm:$0xff]
  %v48 = vld [vmem:[%s2 + $0x10] sm:$0xff]
  %v49 = vld [vmem:[%s2 + $0x18] sm:$0xff]
  %v50 = vld [vmem:[%s3] sm:$0xff]
  %v51 = vld [vmem:[%s3 + $0x8] sm:$0xff]
  %v52 = vld [vmem:[%s3 + $0x10] sm:$0xff]
  %v53 = vld [vmem:[%s3 + $0x18] sm:$0xff]
  %vm54 = vcmask 261120
  %v56 = vsel %vm54, %v50, 0
  %v59 = vsel %vm54, %v51, 0
  %v62 = vsel %vm54, %v52, 0
  %v65 = vsel %vm54, %v53, 0
  %67 = vmatprep.subr.mxu0 0.0
  %68 = vmatpush1.msra.mxu0 0.0
  %69 = vmatprep.subr.mxu0 0.0
  %70 = vmatpush1.msra.mxu0 0.0
  %71 = vmatprep.subr.mxu0 0.0
  %72 = vmatpush1.msra.mxu0 0.0
  %73 = vmatprep.subr.mxu0 0.0
  %74 = vmatpush1.msra.mxu0 0.0
  %75 = vmatprep.subr.mxu0 0.0
  %76 = vmatpush1.msra.mxu0 0.0
  %77 = vmatprep.subr.mxu0 0.0
  %78 = vmatpush1.msra.mxu0 0.0
  %79 = vmatprep.subr.mxu0 0.0
  %80 = vmatpush1.msra.mxu0 0.0
  %81 = vmatprep.subr.mxu0 0.0
  %82 = vmatpush1.msra.mxu0 0.0
  %83 = vmatprep.subr.mxu0 0.0
  %84 = vmatpush1.msra.mxu0 0.0
  %85 = vmatprep.subr.mxu0 0.0
  %86 = vmatpush1.msra.mxu0 0.0
  %87 = vmatprep.subr.mxu0 0.0
  %88 = vmatpush1.msra.mxu0 0.0
  %89 = vmatprep.subr.mxu0 0.0
  %90 = vmatpush1.msra.mxu0 0.0
  %91 = vmatprep.subr.mxu0 0.0
  %92 = vmatpush1.msra.mxu0 %v45
  %93 = vmatprep.subr.mxu0 0.0
  %94 = vmatpush1.msra.mxu0 %v44
  %95 = vmatprep.subr.mxu0 0.0
  %96 = vmatpush1.msra.mxu0 %v43
  %97 = vmatprep.subr.mxu0 0.0
  %98 = vmatpush1.msra.mxu0 %v42
  %99 = vmatprep.subr.mxu0 0.0
  %100 = vmatpush2.msra.mxu0 0.0
  %101 = vmatprep.subr.mxu0 0.0
  %102 = vmatpush2.msra.mxu0 0.0
  %103 = vmatprep.subr.mxu0 0.0
  %104 = vmatpush2.msra.mxu0 0.0
  %105 = vmatprep.subr.mxu0 0.0
  %106 = vmatpush2.msra.mxu0 0.0
  %107 = vmatprep.subr.mxu0 0.0
  %108 = vmatpush2.msra.mxu0 0.0
  %109 = vmatprep.subr.mxu0 0.0
  %110 = vmatpush2.msra.mxu0 0.0
  %111 = vmatprep.subr.mxu0 0.0
  %112 = vmatpush2.msra.mxu0 0.0
  %113 = vmatprep.subr.mxu0 0.0
  %114 = vmatpush2.msra.mxu0 0.0
  %115 = vmatprep.subr.mxu0 0.0
  %116 = vmatpush2.msra.mxu0 0.0
  %117 = vmatprep.subr.mxu0 0.0
  %118 = vmatpush2.msra.mxu0 0.0
  %119 = vmatprep.subr.mxu0 0.0
  %120 = vmatpush2.msra.mxu0 0.0
  %121 = vmatprep.subr.mxu0 0.0
  %122 = vmatpush2.msra.mxu0 0.0
  %123 = vmatprep.subr.mxu0 0.0
  %124 = vmatpush2.msra.mxu0 0.0
  %125 = vmatprep.subr.mxu0 0.0
  %126 = vmatpush2.msra.mxu0 0.0
  %127 = vmatprep.subr.mxu0 0.0
  %128 = vmatpush2.msra.mxu0 0.0
  %129 = vmatprep.subr.mxu0 0.0
  %130 = vmatpush2.msra.mxu0 0.0
  %131 = vmatprep.mubr.f32.mxu0 0.0
  %132 = vmatmul.mubr.f32.gmra.mxu0 %v56
  %v133 = vpop.f32.mrf.mxu0
  %v134 = vadd.f32 0.0, %v133
  %v135 = vpop.f32.mrf.mxu0
  %136 = vmatprep.mubr.f32.mxu0 0.0
  %137 = vmatmul.mubr.f32.gmra.mxu0 %v59
  %v138 = vpop.f32.mrf.mxu0
  %v139 = vadd.f32 0.0, %v138
  %v140 = vpop.f32.mrf.mxu0
  %141 = vmatprep.mubr.f32.mxu0 0.0
  %142 = vmatmul.mubr.f32.gmra.mxu0 %v62
  %v143 = vpop.f32.mrf.mxu0
  %v144 = vadd.f32 0.0, %v143
  %v145 = vpop.f32.mrf.mxu0
  %146 = vmatprep.mubr.f32.mxu0 0.0
  %147 = vmatmul.mubr.f32.gmra.mxu0 %v65
  %v148 = vpop.f32.mrf.mxu0
  %v149 = vadd.f32 0.0, %v148
  %v150 = vpop.f32.mrf.mxu0
  %151 = vdwg.mxu0
  %v153 = vsel %vm54, %v46, 0
  %v156 = vsel %vm54, %v47, 0
  %v159 = vsel %vm54, %v48, 0
  %v162 = vsel %vm54, %v49, 0
  %164 = vmatprep.subr.mxu0 0.0
  %165 = vmatpush1.msra.mxu0 0.0
  %166 = vmatprep.subr.mxu0 0.0
  %167 = vmatpush1.msra.mxu0 0.0
  %168 = vmatprep.subr.mxu0 0.0
  %169 = vmatpush1.msra.mxu0 0.0
  %170 = vmatprep.subr.mxu0 0.0
  %171 = vmatpush1.msra.mxu0 0.0
  %172 = vmatprep.subr.mxu0 0.0
  %173 = vmatpush1.msra.mxu0 0.0
  %174 = vmatprep.subr.mxu0 0.0
  %175 = vmatpush1.msra.mxu0 0.0
  %176 = vmatprep.subr.mxu0 0.0
  %177 = vmatpush1.msra.mxu0 0.0
  %178 = vmatprep.subr.mxu0 0.0
  %179 = vmatpush1.msra.mxu0 0.0
  %180 = vmatprep.subr.mxu0 0.0
  %181 = vmatpush1.msra.mxu0 0.0
  %182 = vmatprep.subr.mxu0 0.0
  %183 = vmatpush1.msra.mxu0 0.0
  %184 = vmatprep.subr.mxu0 0.0
  %185 = vmatpush1.msra.mxu0 0.0
  %186 = vmatprep.subr.mxu0 0.0
  %187 = vmatpush1.msra.mxu0 0.0
  %188 = vmatprep.subr.mxu0 0.0
  %189 = vmatpush1.msra.mxu0 %v41
  %190 = vmatprep.subr.mxu0 0.0
  %191 = vmatpush1.msra.mxu0 %v40
  %192 = vmatprep.subr.mxu0 0.0
  %193 = vmatpush1.msra.mxu0 %v39
  %194 = vmatprep.subr.mxu0 0.0
  %195 = vmatpush1.msra.mxu0 %v38
  %196 = vmatprep.subr.mxu0 0.0
  %197 = vmatpush2.msra.mxu0 0.0
  %198 = vmatprep.subr.mxu0 0.0
  %199 = vmatpush2.msra.mxu0 0.0
  %200 = vmatprep.subr.mxu0 0.0
  %201 = vmatpush2.msra.mxu0 0.0
  %202 = vmatprep.subr.mxu0 0.0
  %203 = vmatpush2.msra.mxu0 0.0
  %204 = vmatprep.subr.mxu0 0.0
  %205 = vmatpush2.msra.mxu0 0.0
  %206 = vmatprep.subr.mxu0 0.0
  %207 = vmatpush2.msra.mxu0 0.0
  %208 = vmatprep.subr.mxu0 0.0
  %209 = vmatpush2.msra.mxu0 0.0
  %210 = vmatprep.subr.mxu0 0.0
  %211 = vmatpush2.msra.mxu0 0.0
  %212 = vmatprep.subr.mxu0 0.0
  %213 = vmatpush2.msra.mxu0 0.0
  %214 = vmatprep.subr.mxu0 0.0
  %215 = vmatpush2.msra.mxu0 0.0
  %216 = vmatprep.subr.mxu0 0.0
  %217 = vmatpush2.msra.mxu0 0.0
  %218 = vmatprep.subr.mxu0 0.0
  %219 = vmatpush2.msra.mxu0 0.0
  %220 = vmatprep.subr.mxu0 0.0
  %221 = vmatpush2.msra.mxu0 0.0
  %222 = vmatprep.subr.mxu0 0.0
  %223 = vmatpush2.msra.mxu0 0.0
  %224 = vmatprep.subr.mxu0 0.0
  %225 = vmatpush2.msra.mxu0 0.0
  %226 = vmatprep.subr.mxu0 0.0
  %227 = vmatpush2.msra.mxu0 0.0
  %228 = vmatprep.mubr.f32.mxu0 0.0
  %229 = vmatmul.mubr.f32.gmra.mxu0 %v153
  %v230 = vpop.f32.mrf.mxu0
  %v231 = vadd.f32 %v134, %v230
  %v232 = vpop.f32.mrf.mxu0
  %233 = vmatprep.mubr.f32.mxu0 0.0
  %234 = vmatmul.mubr.f32.gmra.mxu0 %v156
  %v235 = vpop.f32.mrf.mxu0
  %v236 = vadd.f32 %v139, %v235
  %v237 = vpop.f32.mrf.mxu0
  %238 = vmatprep.mubr.f32.mxu0 0.0
  %239 = vmatmul.mubr.f32.gmra.mxu0 %v159
  %v240 = vpop.f32.mrf.mxu0
  %v241 = vadd.f32 %v144, %v240
  %v242 = vpop.f32.mrf.mxu0
  %243 = vmatprep.mubr.f32.mxu0 0.0
  %244 = vmatmul.mubr.f32.gmra.mxu0 %v162
  %v245 = vpop.f32.mrf.mxu0
  %v246 = vadd.f32 %v149, %v245
  %v247 = vpop.f32.mrf.mxu0
  %248 = vdwg.mxu0
  %v249 = vld [vmem:[%s4] sm:$0xff]
  %v250 = vld [vmem:[%s4 + $0x8] sm:$0xff]
  %v251 = vld [vmem:[%s4 + $0x10] sm:$0xff]
  %v252 = vld [vmem:[%s4 + $0x18] sm:$0xff]
  %v253 = vadd.f32 %v231, %v249
  %v254 = vadd.f32 %v236, %v250
  %v255 = vadd.f32 %v241, %v251
  %v256 = vadd.f32 %v246, %v252
  %v257 = vsub.f32 0.0, %v253
  %v258 = vsub.f32 0.0, %v254
  %v259 = vsub.f32 0.0, %v255
  %v260 = vsub.f32 0.0, %v256
  %v261 = vmul.f32 %v257, 1.442695
  %v262 = vpow.pop %v261
  %v263 = vmul.f32 %v258, 1.442695
  %v264 = vpow.pop %v263
  %v265 = vmul.f32 %v259, 1.442695
  %v266 = vpow.pop %v265
  %v267 = vmul.f32 %v260, 1.442695
  %v268 = vpow.pop %v267
  %v269 = vadd.f32 %v262, 1.0
  %v270 = vadd.f32 %v264, 1.0
  %v271 = vadd.f32 %v266, 1.0
  %v272 = vadd.f32 %v268, 1.0
  %v273 = vrcp.pop %v269
  %v274 = vmul.f32 1.0, %v273
  %v275 = vrcp.pop %v270
  %v276 = vmul.f32 1.0, %v275
  %v277 = vrcp.pop %v271
  %v278 = vmul.f32 1.0, %v277
  %v279 = vrcp.pop %v272
  %v280 = vmul.f32 1.0, %v279
  %v281 = vld [vmem:[%s5] sm:$0xff]
  %v282 = vld [vmem:[%s5 + $0x8] sm:$0xff]
  %v283 = vld [vmem:[%s5 + $0x10] sm:$0xff]
  %v284 = vld [vmem:[%s5 + $0x18] sm:$0xff]
  %v285 = vld [vmem:[%s6] sm:$0xff]
  %v286 = vld [vmem:[%s6 + $0x8] sm:$0xff]
  %v287 = vld [vmem:[%s6 + $0x10] sm:$0xff]
  %v288 = vld [vmem:[%s6 + $0x18] sm:$0xff]
  %v290 = vsel %vm54, %v285, 0
  %v293 = vsel %vm54, %v286, 0
  %v296 = vsel %vm54, %v287, 0
  %v299 = vsel %vm54, %v288, 0
  %301 = vmatprep.subr.mxu0 0.0
  %302 = vmatpush1.msra.mxu0 0.0
  %303 = vmatprep.subr.mxu0 0.0
  %304 = vmatpush1.msra.mxu0 0.0
  %305 = vmatprep.subr.mxu0 0.0
  %306 = vmatpush1.msra.mxu0 0.0
  %307 = vmatprep.subr.mxu0 0.0
  %308 = vmatpush1.msra.mxu0 0.0
  %309 = vmatprep.subr.mxu0 0.0
  %310 = vmatpush1.msra.mxu0 0.0
  %311 = vmatprep.subr.mxu0 0.0
  %312 = vmatpush1.msra.mxu0 0.0
  %313 = vmatprep.subr.mxu0 0.0
  %314 = vmatpush1.msra.mxu0 0.0
  %315 = vmatprep.subr.mxu0 0.0
  %316 = vmatpush1.msra.mxu0 0.0
  %317 = vmatprep.subr.mxu0 0.0
  %318 = vmatpush1.msra.mxu0 0.0
  %319 = vmatprep.subr.mxu0 0.0
  %320 = vmatpush1.msra.mxu0 0.0
  %321 = vmatprep.subr.mxu0 0.0
  %322 = vmatpush1.msra.mxu0 0.0
  %323 = vmatprep.subr.mxu0 0.0
  %324 = vmatpush1.msra.mxu0 0.0
  %325 = vmatprep.subr.mxu0 0.0
  %326 = vmatpush1.msra.mxu0 %v45
  %327 = vmatprep.subr.mxu0 0.0
  %328 = vmatpush1.msra.mxu0 %v44
  %329 = vmatprep.subr.mxu0 0.0
  %330 = vmatpush1.msra.mxu0 %v43
  %331 = vmatprep.subr.mxu0 0.0
  %332 = vmatpush1.msra.mxu0 %v42
  %333 = vmatprep.subr.mxu0 0.0
  %334 = vmatpush2.msra.mxu0 0.0
  %335 = vmatprep.subr.mxu0 0.0
  %336 = vmatpush2.msra.mxu0 0.0
  %337 = vmatprep.subr.mxu0 0.0
  %338 = vmatpush2.msra.mxu0 0.0
  %339 = vmatprep.subr.mxu0 0.0
  %340 = vmatpush2.msra.mxu0 0.0
  %341 = vmatprep.subr.mxu0 0.0
  %342 = vmatpush2.msra.mxu0 0.0
  %343 = vmatprep.subr.mxu0 0.0
  %344 = vmatpush2.msra.mxu0 0.0
  %345 = vmatprep.subr.mxu0 0.0
  %346 = vmatpush2.msra.mxu0 0.0
  %347 = vmatprep.subr.mxu0 0.0
  %348 = vmatpush2.msra.mxu0 0.0
  %349 = vmatprep.subr.mxu0 0.0
  %350 = vmatpush2.msra.mxu0 0.0
  %351 = vmatprep.subr.mxu0 0.0
  %352 = vmatpush2.msra.mxu0 0.0
  %353 = vmatprep.subr.mxu0 0.0
  %354 = vmatpush2.msra.mxu0 0.0
  %355 = vmatprep.subr.mxu0 0.0
  %356 = vmatpush2.msra.mxu0 0.0
  %357 = vmatprep.subr.mxu0 0.0
  %358 = vmatpush2.msra.mxu0 0.0
  %359 = vmatprep.subr.mxu0 0.0
  %360 = vmatpush2.msra.mxu0 0.0
  %361 = vmatprep.subr.mxu0 0.0
  %362 = vmatpush2.msra.mxu0 0.0
  %363 = vmatprep.subr.mxu0 0.0
  %364 = vmatpush2.msra.mxu0 0.0
  %365 = vmatprep.mubr.f32.mxu0 0.0
  %366 = vmatmul.mubr.f32.gmra.mxu0 %v290
  %v367 = vpop.f32.mrf.mxu0
  %v368 = vadd.f32 0.0, %v367
  %v369 = vpop.f32.mrf.mxu0
  %370 = vmatprep.mubr.f32.mxu0 0.0
  %371 = vmatmul.mubr.f32.gmra.mxu0 %v293
  %v372 = vpop.f32.mrf.mxu0
  %v373 = vadd.f32 0.0, %v372
  %v374 = vpop.f32.mrf.mxu0
  %375 = vmatprep.mubr.f32.mxu0 0.0
  %376 = vmatmul.mubr.f32.gmra.mxu0 %v296
  %v377 = vpop.f32.mrf.mxu0
  %v378 = vadd.f32 0.0, %v377
  %v379 = vpop.f32.mrf.mxu0
  %380 = vmatprep.mubr.f32.mxu0 0.0
  %381 = vmatmul.mubr.f32.gmra.mxu0 %v299
  %v382 = vpop.f32.mrf.mxu0
  %v383 = vadd.f32 0.0, %v382
  %v384 = vpop.f32.mrf.mxu0
  %385 = vdwg.mxu0
  %v387 = vsel %vm54, %v281, 0
  %v390 = vsel %vm54, %v282, 0
  %v393 = vsel %vm54, %v283, 0
  %v396 = vsel %vm54, %v284, 0
  %398 = vmatprep.subr.mxu0 0.0
  %399 = vmatpush1.msra.mxu0 0.0
  %400 = vmatprep.subr.mxu0 0.0
  %401 = vmatpush1.msra.mxu0 0.0
  %402 = vmatprep.subr.mxu0 0.0
  %403 = vmatpush1.msra.mxu0 0.0
  %404 = vmatprep.subr.mxu0 0.0
  %405 = vmatpush1.msra.mxu0 0.0
  %406 = vmatprep.subr.mxu0 0.0
  %407 = vmatpush1.msra.mxu0 0.0
  %408 = vmatprep.subr.mxu0 0.0
  %409 = vmatpush1.msra.mxu0 0.0
  %410 = vmatprep.subr.mxu0 0.0
  %411 = vmatpush1.msra.mxu0 0.0
  %412 = vmatprep.subr.mxu0 0.0
  %413 = vmatpush1.msra.mxu0 0.0
  %414 = vmatprep.subr.mxu0 0.0
  %415 = vmatpush1.msra.mxu0 0.0
  %416 = vmatprep.subr.mxu0 0.0
  %417 = vmatpush1.msra.mxu0 0.0
  %418 = vmatprep.subr.mxu0 0.0
  %419 = vmatpush1.msra.mxu0 0.0
  %420 = vmatprep.subr.mxu0 0.0
  %421 = vmatpush1.msra.mxu0 0.0
  %422 = vmatprep.subr.mxu0 0.0
  %423 = vmatpush1.msra.mxu0 %v41
  %424 = vmatprep.subr.mxu0 0.0
  %425 = vmatpush1.msra.mxu0 %v40
  %426 = vmatprep.subr.mxu0 0.0
  %427 = vmatpush1.msra.mxu0 %v39
  %428 = vmatprep.subr.mxu0 0.0
  %429 = vmatpush1.msra.mxu0 %v38
  %430 = vmatprep.subr.mxu0 0.0
  %431 = vmatpush2.msra.mxu0 0.0
  %432 = vmatprep.subr.mxu0 0.0
  %433 = vmatpush2.msra.mxu0 0.0
  %434 = vmatprep.subr.mxu0 0.0
  %435 = vmatpush2.msra.mxu0 0.0
  %436 = vmatprep.subr.mxu0 0.0
  %437 = vmatpush2.msra.mxu0 0.0
  %438 = vmatprep.subr.mxu0 0.0
  %439 = vmatpush2.msra.mxu0 0.0
  %440 = vmatprep.subr.mxu0 0.0
  %441 = vmatpush2.msra.mxu0 0.0
  %442 = vmatprep.subr.mxu0 0.0
  %443 = vmatpush2.msra.mxu0 0.0
  %444 = vmatprep.subr.mxu0 0.0
  %445 = vmatpush2.msra.mxu0 0.0
  %446 = vmatprep.subr.mxu0 0.0
  %447 = vmatpush2.msra.mxu0 0.0
  %448 = vmatprep.subr.mxu0 0.0
  %449 = vmatpush2.msra.mxu0 0.0
  %450 = vmatprep.subr.mxu0 0.0
  %451 = vmatpush2.msra.mxu0 0.0
  %452 = vmatprep.subr.mxu0 0.0
  %453 = vmatpush2.msra.mxu0 0.0
  %454 = vmatprep.subr.mxu0 0.0
  %455 = vmatpush2.msra.mxu0 0.0
  %456 = vmatprep.subr.mxu0 0.0
  %457 = vmatpush2.msra.mxu0 0.0
  %458 = vmatprep.subr.mxu0 0.0
  %459 = vmatpush2.msra.mxu0 0.0
  %460 = vmatprep.subr.mxu0 0.0
  %461 = vmatpush2.msra.mxu0 0.0
  %462 = vmatprep.mubr.f32.mxu0 0.0
  %463 = vmatmul.mubr.f32.gmra.mxu0 %v387
  %v464 = vpop.f32.mrf.mxu0
  %v465 = vadd.f32 %v368, %v464
  %v466 = vpop.f32.mrf.mxu0
  %467 = vmatprep.mubr.f32.mxu0 0.0
  %468 = vmatmul.mubr.f32.gmra.mxu0 %v390
  %v469 = vpop.f32.mrf.mxu0
  %v470 = vadd.f32 %v373, %v469
  %v471 = vpop.f32.mrf.mxu0
  %472 = vmatprep.mubr.f32.mxu0 0.0
  %473 = vmatmul.mubr.f32.gmra.mxu0 %v393
  %v474 = vpop.f32.mrf.mxu0
  %v475 = vadd.f32 %v378, %v474
  %v476 = vpop.f32.mrf.mxu0
  %477 = vmatprep.mubr.f32.mxu0 0.0
  %478 = vmatmul.mubr.f32.gmra.mxu0 %v396
  %v479 = vpop.f32.mrf.mxu0
  %v480 = vadd.f32 %v383, %v479
  %v481 = vpop.f32.mrf.mxu0
  %482 = vdwg.mxu0
  %v483 = vld [vmem:[%s7] sm:$0xff]
  %v484 = vld [vmem:[%s7 + $0x8] sm:$0xff]
  %v485 = vld [vmem:[%s7 + $0x10] sm:$0xff]
  %v486 = vld [vmem:[%s7 + $0x18] sm:$0xff]
  %v487 = vadd.f32 %v465, %v483
  %v488 = vadd.f32 %v470, %v484
  %v489 = vadd.f32 %v475, %v485
  %v490 = vadd.f32 %v480, %v486
  %v491 = vsub.f32 0.0, %v487
  %v492 = vsub.f32 0.0, %v488
  %v493 = vsub.f32 0.0, %v489
  %v494 = vsub.f32 0.0, %v490
  %v495 = vmul.f32 %v491, 1.442695
  %v496 = vpow.pop %v495
  %v497 = vmul.f32 %v492, 1.442695
  %v498 = vpow.pop %v497
  %v499 = vmul.f32 %v493, 1.442695
  %v500 = vpow.pop %v499
  %v501 = vmul.f32 %v494, 1.442695
  %v502 = vpow.pop %v501
  %v503 = vadd.f32 %v496, 1.0
  %v504 = vadd.f32 %v498, 1.0
  %v505 = vadd.f32 %v500, 1.0
  %v506 = vadd.f32 %v502, 1.0
  %v507 = vrcp.pop %v503
  %v508 = vmul.f32 1.0, %v507
  %v509 = vrcp.pop %v504
  %v510 = vmul.f32 1.0, %v509
  %v511 = vrcp.pop %v505
  %v512 = vmul.f32 1.0, %v511
  %v513 = vrcp.pop %v506
  %v514 = vmul.f32 1.0, %v513
  %v515 = vmul.f32 %v508, %v42
  %v516 = vmul.f32 %v510, %v43
  %v517 = vmul.f32 %v512, %v44
  %v518 = vmul.f32 %v514, %v45
  %v519 = vld [vmem:[%s8] sm:$0xff]
  %v520 = vld [vmem:[%s8 + $0x8] sm:$0xff]
  %v521 = vld [vmem:[%s8 + $0x10] sm:$0xff]
  %v522 = vld [vmem:[%s8 + $0x18] sm:$0xff]
  %v523 = vld [vmem:[%s9] sm:$0xff]
  %v524 = vld [vmem:[%s9 + $0x8] sm:$0xff]
  %v525 = vld [vmem:[%s9 + $0x10] sm:$0xff]
  %v526 = vld [vmem:[%s9 + $0x18] sm:$0xff]
  %v528 = vsel %vm54, %v523, 0
  %v531 = vsel %vm54, %v524, 0
  %v534 = vsel %vm54, %v525, 0
  %v537 = vsel %vm54, %v526, 0
  %539 = vmatprep.subr.mxu0 0.0
  %540 = vmatpush1.msra.mxu0 0.0
  %541 = vmatprep.subr.mxu0 0.0
  %542 = vmatpush1.msra.mxu0 0.0
  %543 = vmatprep.subr.mxu0 0.0
  %544 = vmatpush1.msra.mxu0 0.0
  %545 = vmatprep.subr.mxu0 0.0
  %546 = vmatpush1.msra.mxu0 0.0
  %547 = vmatprep.subr.mxu0 0.0
  %548 = vmatpush1.msra.mxu0 0.0
  %549 = vmatprep.subr.mxu0 0.0
  %550 = vmatpush1.msra.mxu0 0.0
  %551 = vmatprep.subr.mxu0 0.0
  %552 = vmatpush1.msra.mxu0 0.0
  %553 = vmatprep.subr.mxu0 0.0
  %554 = vmatpush1.msra.mxu0 0.0
  %555 = vmatprep.subr.mxu0 0.0
  %556 = vmatpush1.msra.mxu0 0.0
  %557 = vmatprep.subr.mxu0 0.0
  %558 = vmatpush1.msra.mxu0 0.0
  %559 = vmatprep.subr.mxu0 0.0
  %560 = vmatpush1.msra.mxu0 0.0
  %561 = vmatprep.subr.mxu0 0.0
  %562 = vmatpush1.msra.mxu0 0.0
  %563 = vmatprep.subr.mxu0 0.0
  %564 = vmatpush1.msra.mxu0 %v518
  %565 = vmatprep.subr.mxu0 0.0
  %566 = vmatpush1.msra.mxu0 %v517
  %567 = vmatprep.subr.mxu0 0.0
  %568 = vmatpush1.msra.mxu0 %v516
  %569 = vmatprep.subr.mxu0 0.0
  %570 = vmatpush1.msra.mxu0 %v515
  %571 = vmatprep.subr.mxu0 0.0
  %572 = vmatpush2.msra.mxu0 0.0
  %573 = vmatprep.subr.mxu0 0.0
  %574 = vmatpush2.msra.mxu0 0.0
  %575 = vmatprep.subr.mxu0 0.0
  %576 = vmatpush2.msra.mxu0 0.0
  %577 = vmatprep.subr.mxu0 0.0
  %578 = vmatpush2.msra.mxu0 0.0
  %579 = vmatprep.subr.mxu0 0.0
  %580 = vmatpush2.msra.mxu0 0.0
  %581 = vmatprep.subr.mxu0 0.0
  %582 = vmatpush2.msra.mxu0 0.0
  %583 = vmatprep.subr.mxu0 0.0
  %584 = vmatpush2.msra.mxu0 0.0
  %585 = vmatprep.subr.mxu0 0.0
  %586 = vmatpush2.msra.mxu0 0.0
  %587 = vmatprep.subr.mxu0 0.0
  %588 = vmatpush2.msra.mxu0 0.0
  %589 = vmatprep.subr.mxu0 0.0
  %590 = vmatpush2.msra.mxu0 0.0
  %591 = vmatprep.subr.mxu0 0.0
  %592 = vmatpush2.msra.mxu0 0.0
  %593 = vmatprep.subr.mxu0 0.0
  %594 = vmatpush2.msra.mxu0 0.0
  %595 = vmatprep.subr.mxu0 0.0
  %596 = vmatpush2.msra.mxu0 0.0
  %597 = vmatprep.subr.mxu0 0.0
  %598 = vmatpush2.msra.mxu0 0.0
  %599 = vmatprep.subr.mxu0 0.0
  %600 = vmatpush2.msra.mxu0 0.0
  %601 = vmatprep.subr.mxu0 0.0
  %602 = vmatpush2.msra.mxu0 0.0
  %603 = vmatprep.mubr.f32.mxu0 0.0
  %604 = vmatmul.mubr.f32.gmra.mxu0 %v528
  %v605 = vpop.f32.mrf.mxu0
  %v606 = vadd.f32 0.0, %v605
  %v607 = vpop.f32.mrf.mxu0
  %608 = vmatprep.mubr.f32.mxu0 0.0
  %609 = vmatmul.mubr.f32.gmra.mxu0 %v531
  %v610 = vpop.f32.mrf.mxu0
  %v611 = vadd.f32 0.0, %v610
  %v612 = vpop.f32.mrf.mxu0
  %613 = vmatprep.mubr.f32.mxu0 0.0
  %614 = vmatmul.mubr.f32.gmra.mxu0 %v534
  %v615 = vpop.f32.mrf.mxu0
  %v616 = vadd.f32 0.0, %v615
  %v617 = vpop.f32.mrf.mxu0
  %618 = vmatprep.mubr.f32.mxu0 0.0
  %619 = vmatmul.mubr.f32.gmra.mxu0 %v537
  %v620 = vpop.f32.mrf.mxu0
  %v621 = vadd.f32 0.0, %v620
  %v622 = vpop.f32.mrf.mxu0
  %623 = vdwg.mxu0
  %v625 = vsel %vm54, %v519, 0
  %v628 = vsel %vm54, %v520, 0
  %v631 = vsel %vm54, %v521, 0
  %v634 = vsel %vm54, %v522, 0
  %636 = vmatprep.subr.mxu0 0.0
  %637 = vmatpush1.msra.mxu0 0.0
  %638 = vmatprep.subr.mxu0 0.0
  %639 = vmatpush1.msra.mxu0 0.0
  %640 = vmatprep.subr.mxu0 0.0
  %641 = vmatpush1.msra.mxu0 0.0
  %642 = vmatprep.subr.mxu0 0.0
  %643 = vmatpush1.msra.mxu0 0.0
  %644 = vmatprep.subr.mxu0 0.0
  %645 = vmatpush1.msra.mxu0 0.0
  %646 = vmatprep.subr.mxu0 0.0
  %647 = vmatpush1.msra.mxu0 0.0
  %648 = vmatprep.subr.mxu0 0.0
  %649 = vmatpush1.msra.mxu0 0.0
  %650 = vmatprep.subr.mxu0 0.0
  %651 = vmatpush1.msra.mxu0 0.0
  %652 = vmatprep.subr.mxu0 0.0
  %653 = vmatpush1.msra.mxu0 0.0
  %654 = vmatprep.subr.mxu0 0.0
  %655 = vmatpush1.msra.mxu0 0.0
  %656 = vmatprep.subr.mxu0 0.0
  %657 = vmatpush1.msra.mxu0 0.0
  %658 = vmatprep.subr.mxu0 0.0
  %659 = vmatpush1.msra.mxu0 0.0
  %660 = vmatprep.subr.mxu0 0.0
  %661 = vmatpush1.msra.mxu0 %v41
  %662 = vmatprep.subr.mxu0 0.0
  %663 = vmatpush1.msra.mxu0 %v40
  %664 = vmatprep.subr.mxu0 0.0
  %665 = vmatpush1.msra.mxu0 %v39
  %666 = vmatprep.subr.mxu0 0.0
  %667 = vmatpush1.msra.mxu0 %v38
  %668 = vmatprep.subr.mxu0 0.0
  %669 = vmatpush2.msra.mxu0 0.0
  %670 = vmatprep.subr.mxu0 0.0
  %671 = vmatpush2.msra.mxu0 0.0
  %672 = vmatprep.subr.mxu0 0.0
  %673 = vmatpush2.msra.mxu0 0.0
  %674 = vmatprep.subr.mxu0 0.0
  %675 = vmatpush2.msra.mxu0 0.0
  %676 = vmatprep.subr.mxu0 0.0
  %677 = vmatpush2.msra.mxu0 0.0
  %678 = vmatprep.subr.mxu0 0.0
  %679 = vmatpush2.msra.mxu0 0.0
  %680 = vmatprep.subr.mxu0 0.0
  %681 = vmatpush2.msra.mxu0 0.0
  %682 = vmatprep.subr.mxu0 0.0
  %683 = vmatpush2.msra.mxu0 0.0
  %684 = vmatprep.subr.mxu0 0.0
  %685 = vmatpush2.msra.mxu0 0.0
  %686 = vmatprep.subr.mxu0 0.0
  %687 = vmatpush2.msra.mxu0 0.0
  %688 = vmatprep.subr.mxu0 0.0
  %689 = vmatpush2.msra.mxu0 0.0
  %690 = vmatprep.subr.mxu0 0.0
  %691 = vmatpush2.msra.mxu0 0.0
  %692 = vmatprep.subr.mxu0 0.0
  %693 = vmatpush2.msra.mxu0 0.0
  %694 = vmatprep.subr.mxu0 0.0
  %695 = vmatpush2.msra.mxu0 0.0
  %696 = vmatprep.subr.mxu0 0.0
  %697 = vmatpush2.msra.mxu0 0.0
  %698 = vmatprep.subr.mxu0 0.0
  %699 = vmatpush2.msra.mxu0 0.0
  %700 = vmatprep.mubr.f32.mxu0 0.0
  %701 = vmatmul.mubr.f32.gmra.mxu0 %v625
  %v702 = vpop.f32.mrf.mxu0
  %v703 = vadd.f32 %v606, %v702
  %v704 = vpop.f32.mrf.mxu0
  %705 = vmatprep.mubr.f32.mxu0 0.0
  %706 = vmatmul.mubr.f32.gmra.mxu0 %v628
  %v707 = vpop.f32.mrf.mxu0
  %v708 = vadd.f32 %v611, %v707
  %v709 = vpop.f32.mrf.mxu0
  %710 = vmatprep.mubr.f32.mxu0 0.0
  %711 = vmatmul.mubr.f32.gmra.mxu0 %v631
  %v712 = vpop.f32.mrf.mxu0
  %v713 = vadd.f32 %v616, %v712
  %v714 = vpop.f32.mrf.mxu0
  %715 = vmatprep.mubr.f32.mxu0 0.0
  %716 = vmatmul.mubr.f32.gmra.mxu0 %v634
  %v717 = vpop.f32.mrf.mxu0
  %v718 = vadd.f32 %v621, %v717
  %v719 = vpop.f32.mrf.mxu0
  %720 = vdwg.mxu0
  %v721 = vld [vmem:[%s10] sm:$0xff]
  %v722 = vld [vmem:[%s10 + $0x8] sm:$0xff]
  %v723 = vld [vmem:[%s10 + $0x10] sm:$0xff]
  %v724 = vld [vmem:[%s10 + $0x18] sm:$0xff]
  %v725 = vadd.f32 %v703, %v721
  %v726 = vadd.f32 %v708, %v722
  %v727 = vadd.f32 %v713, %v723
  %v728 = vadd.f32 %v718, %v724
  %v729 = vtanh.pop %v725
  %v730 = vtanh.pop %v726
  %v731 = vtanh.pop %v727
  %v732 = vtanh.pop %v728
  %v733 = vsub.f32 1.0, %v274
  %v734 = vsub.f32 1.0, %v276
  %v735 = vsub.f32 1.0, %v278
  %v736 = vsub.f32 1.0, %v280
  %v737 = vmul.f32 %v733, %v42
  %v738 = vmul.f32 %v734, %v43
  %v739 = vmul.f32 %v735, %v44
  %v740 = vmul.f32 %v736, %v45
  %v741 = vmul.f32 %v274, %v729
  %v742 = vmul.f32 %v276, %v730
  %v743 = vmul.f32 %v278, %v731
  %v744 = vmul.f32 %v280, %v732
  %v745 = vadd.f32 %v737, %v741
  %v746 = vadd.f32 %v738, %v742
  %v747 = vadd.f32 %v739, %v743
  %v748 = vadd.f32 %v740, %v744
  %vm749 = vcmask 64512
  %750 = vst.msk [vmem:[%s11] sm:$0xff] %vm749, %v745
  %751 = vst.msk [vmem:[%s11 + $0x8] sm:$0xff] %vm749, %v746
  %752 = vst.msk [vmem:[%s11 + $0x10] sm:$0xff] %vm749, %v747
  %753 = vst.msk [vmem:[%s11 + $0x18] sm:$0xff] %vm749, %v748
  // Predicated region
  $region46: #{mat_gru_cell_forward.5} parent=0 // pred_check
    _
  $region47: #{mat_gru_cell_forward.5} parent=0 // pred_check_branch
    %755 = sbr.rel (0) target = $region49
  $region48: #{mat_gru_cell_forward.5} parent=0 // pred_region
    _
  $region49: #{mat_gru_cell_forward.5} parent=0 // pred_fallthru
    _
  // Predicated region
  $region50: #{mat_gru_cell_forward.5} parent=0 // pred_check
    _
  $region51: #{mat_gru_cell_forward.5} parent=0 // pred_check_branch
    %757 = sbr.rel (0) target = $region53
  $region52: #{mat_gru_cell_forward.5} parent=0 // pred_region
    _
  $region53: #{mat_gru_cell_forward.5} parent=0 // pred_fallthru
    _

</llo_original>
